<compile_context>
chip_gen: v6e
topology: v6e:2x2x1
jax: 0.10.0
libtpu: 0.0.40
codegen_flags: <defaults>
</compile_context>

<pallas_src>
import math
import functools

import jax
import jax.numpy as jnp
from jax.experimental import pallas as pl
from jax.experimental.pallas import tpu as pltpu


# ------------------------------ fused MHA kernel ------------------------------
def _fused_mha_kernel(q_ref, k_ref, v_ref, wqkv_ref, bqkv_ref, wo_ref, bo_ref,
                      out_ref, wavg_ref, *, num_heads, head_dim, scale):
    """One batch element per grid step. All heads handled inside the body.

    q_ref:    (L, E)      batch-major query slice
    k_ref:    (S, E)      batch-major key slice
    v_ref:    (S, E)      batch-major value slice
    wqkv_ref: (3E, E)     packed in_proj weight (PyTorch layout [Wq; Wk; Wv])
    bqkv_ref: (3, E)      packed in_proj bias rows [bq; bk; bv]
    wo_ref:   (E, E)      out_proj weight
    bo_ref:   (1, E)      out_proj bias
    out_ref:  (L, E)      attention output (batch-major)
    wavg_ref: (L, S)      head-averaged attention weights
    """
    E = num_heads * head_dim
    # dot_general contracting the last dims of both operands == x @ W.T
    dn = (((1,), (1,)), ((), ()))

    q_in = q_ref[...]                      # (L, E)
    k_in = k_ref[...]                      # (S, E)
    v_in = v_ref[...]                      # (S, E)

    # ---- fused in-projections (one kernel, three MXU matmuls, f32 accum) ----
    wq = wqkv_ref[0:E, :]
    wk = wqkv_ref[E:2 * E, :]
    wv = wqkv_ref[2 * E:3 * E, :]
    bq = bqkv_ref[0:1, :]
    bk = bqkv_ref[1:2, :]
    bv = bqkv_ref[2:3, :]

    Q = jax.lax.dot_general(q_in, wq, dn, preferred_element_type=jnp.float32) + bq  # (L, E)
    K = jax.lax.dot_general(k_in, wk, dn, preferred_element_type=jnp.float32) + bk  # (S, E)
    V = jax.lax.dot_general(v_in, wv, dn, preferred_element_type=jnp.float32) + bv  # (S, E)

    # ---- per-head attention, statically unrolled over heads -----------------
    wsum = None
    ctx_parts = []
    for h in range(num_heads):
        lo = h * head_dim
        hi = lo + head_dim
        qh = Q[:, lo:hi] * scale                                   # (L, Dh)
        kh = K[:, lo:hi]                                           # (S, Dh)
        vh = V[:, lo:hi]                                           # (S, Dh)

        s = jax.lax.dot_general(qh, kh, dn,
                                preferred_element_type=jnp.float32)  # (L, S)
        m = jnp.max(s, axis=-1, keepdims=True)
        e = jnp.exp(s - m)
        denom = jnp.sum(e, axis=-1, keepdims=True)
        p = e * pl.reciprocal(denom, approx=False)                  # softmax rows

        wsum = p if wsum is None else wsum + p
        ctx_parts.append(
            jnp.dot(p, vh, preferred_element_type=jnp.float32))     # (L, Dh)

    ctx = jnp.concatenate(ctx_parts, axis=1)                        # (L, E) lane-dense

    # ---- output projection ---------------------------------------------------
    out = jax.lax.dot_general(ctx, wo_ref[...], dn,
                              preferred_element_type=jnp.float32) + bo_ref[...]
    out_ref[...] = out
    wavg_ref[...] = wsum * (1.0 / num_heads)


# ------------------------------ module forward --------------------------------
@functools.partial(jax.jit, static_argnames=("num_heads",))
def mha_forward(query, key, value, in_proj_w, in_proj_b, out_proj_w, out_proj_b,
                *, num_heads):
    L, N, E = query.shape
    S = key.shape[0]
    H = num_heads
    Dh = E // H
    scale = 1.0 / math.sqrt(Dh)

    # Batch-major activation views (tiny layout glue; fused by XLA under jit).
    q_bm = jnp.transpose(query, (1, 0, 2))     # (N, L, E)
    k_bm = jnp.transpose(key, (1, 0, 2))       # (N, S, E)
    v_bm = jnp.transpose(value, (1, 0, 2))     # (N, S, E)
    b_qkv = in_proj_b.reshape(3, E)            # rows [bq; bk; bv]
    b_o = out_proj_b.reshape(1, E)

    kernel = functools.partial(_fused_mha_kernel,
                               num_heads=H, head_dim=Dh, scale=scale)

    out_bm, attn_weights = pl.pallas_call(
        kernel,
        out_shape=(
            jax.ShapeDtypeStruct((N, L, E), jnp.float32),   # attn output, batch-major
            jax.ShapeDtypeStruct((N, L, S), jnp.float32),   # head-averaged weights
        ),
        grid=(N,),
        in_specs=[
            pl.BlockSpec((None, L, E), lambda n: (n, 0, 0)),
            pl.BlockSpec((None, S, E), lambda n: (n, 0, 0)),
            pl.BlockSpec((None, S, E), lambda n: (n, 0, 0)),
            pl.BlockSpec((3 * E, E), lambda n: (0, 0)),
            pl.BlockSpec((3, E), lambda n: (0, 0)),
            pl.BlockSpec((E, E), lambda n: (0, 0)),
            pl.BlockSpec((1, E), lambda n: (0, 0)),
        ],
        out_specs=(
            pl.BlockSpec((None, L, E), lambda n: (n, 0, 0)),
            pl.BlockSpec((None, L, S), lambda n: (n, 0, 0)),
        ),
        compiler_params=pltpu.CompilerParams(
            dimension_semantics=("parallel",)),
    )(q_bm, k_bm, v_bm, in_proj_w, b_qkv, out_proj_w, b_o)

    attn_output = jnp.transpose(out_bm, (1, 0, 2))          # back to (L, N, E)
    return attn_output, attn_weights


# ------------------------------ pure-JAX reference -----------------------------
def mha_reference(query, key, value, in_proj_w, in_proj_b, out_proj_w,
                  out_proj_b, num_heads):
    L, N, E = query.shape
    S = key.shape[0]
    H = num_heads
    Dh = E // H
    Wq, Wk, Wv = in_proj_w[:E], in_proj_w[E:2 * E], in_proj_w[2 * E:]
    bq, bk, bv = in_proj_b[:E], in_proj_b[E:2 * E], in_proj_b[2 * E:]
    Q = query @ Wq.T + bq
    K = key @ Wk.T + bk
    V = value @ Wv.T + bv
    Qh = Q.reshape(L, N, H, Dh).transpose(1, 2, 0, 3)
    Kh = K.reshape(S, N, H, Dh).transpose(1, 2, 0, 3)
    Vh = V.reshape(S, N, H, Dh).transpose(1, 2, 0, 3)
    scores = jnp.einsum("nhld,nhsd->nhls", Qh, Kh) / math.sqrt(Dh)
    P = jax.nn.softmax(scores, axis=-1)
    ctx = jnp.einsum("nhls,nhsd->nhld", P, Vh)
    ctx2 = ctx.transpose(2, 0, 1, 3).reshape(L * N, E)
    out = (ctx2 @ out_proj_w.T + out_proj_b).reshape(L, N, E)
    return out, P.mean(axis=1)


# ----------------------------------- main --------------------------------------
if __name__ == "__main__":
    embed_size, heads = 32, 8
    L, S, N = 8, 8, 2                     # target seq, source seq, batch

    k0 = jax.random.PRNGKey(0)
    ks = jax.random.split(k0, 7)

    query = jax.random.normal(ks[0], (L, N, embed_size), jnp.float32)
    key = jax.random.normal(ks[1], (S, N, embed_size), jnp.float32)
    value = jax.random.normal(ks[2], (S, N, embed_size), jnp.float32)

    # deterministic synthetic parameters (shapes match nn.MultiheadAttention)
    in_proj_w = jax.random.normal(ks[3], (3 * embed_size, embed_size),
                                  jnp.float32) / math.sqrt(embed_size)
    in_proj_b = jax.random.normal(ks[4], (3 * embed_size,), jnp.float32) * 0.02
    out_proj_w = jax.random.normal(ks[5], (embed_size, embed_size),
                                   jnp.float32) / math.sqrt(embed_size)
    out_proj_b = jax.random.normal(ks[6], (embed_size,), jnp.float32) * 0.02

    attn_out, attn_w = mha_forward(query, key, value, in_proj_w, in_proj_b,
                                   out_proj_w, out_proj_b, num_heads=heads)
    jax.block_until_ready((attn_out, attn_w))

    ref_out, ref_w = mha_reference(query, key, value, in_proj_w, in_proj_b,
                                   out_proj_w, out_proj_b, heads)

    assert attn_out.shape == (L, N, embed_size)
    assert attn_w.shape == (N, L, S)
    assert jnp.allclose(attn_out, ref_out, rtol=1e-4, atol=1e-4)
    assert jnp.allclose(attn_w, ref_w, rtol=1e-4, atol=1e-4)

    print("KERNEL_OK")
</pallas_src>

<mosaic_0001>
module attributes {stable_mosaic.version = 11 : i64} {
  func.func @_fused_mha_kernel(%arg0: i32, %arg1: memref<1x8x32xf32, #tpu.memory_space<vmem>>, %arg2: memref<1x8x32xf32, #tpu.memory_space<vmem>>, %arg3: memref<1x8x32xf32, #tpu.memory_space<vmem>>, %arg4: memref<96x32xf32, #tpu.memory_space<vmem>>, %arg5: memref<3x32xf32, #tpu.memory_space<vmem>>, %arg6: memref<32x32xf32, #tpu.memory_space<vmem>>, %arg7: memref<1x32xf32, #tpu.memory_space<vmem>>, %arg8: memref<1x8x32xf32, #tpu.memory_space<vmem>>, %arg9: memref<1x8x8xf32, #tpu.memory_space<vmem>>) attributes {dimension_semantics = [#tpu.dimension_semantics<parallel>], iteration_bounds = array<i64: 2>, scalar_prefetch = 0 : i64, scratch_operands = 0 : i64, tpu.core_type = #tpu.core_type<tc>, window_params = [{transform_indices = @transform_0, window_bounds = array<i64: 1, 8, 32>}, {transform_indices = @transform_1, window_bounds = array<i64: 1, 8, 32>}, {transform_indices = @transform_2, window_bounds = array<i64: 1, 8, 32>}, {pipeline_mode = #tpu.pipeline_mode<synchronous>, transform_indices = @transform_3, window_bounds = array<i64: 96, 32>}, {pipeline_mode = #tpu.pipeline_mode<synchronous>, transform_indices = @transform_4, window_bounds = array<i64: 3, 32>}, {pipeline_mode = #tpu.pipeline_mode<synchronous>, transform_indices = @transform_5, window_bounds = array<i64: 32, 32>}, {pipeline_mode = #tpu.pipeline_mode<synchronous>, transform_indices = @transform_6, window_bounds = array<i64: 1, 32>}, {transform_indices = @transform_7, window_bounds = array<i64: 1, 8, 32>}, {transform_indices = @transform_8, window_bounds = array<i64: 1, 8, 8>}]} {
    %c0 = arith.constant 0 : index
    %c0_0 = arith.constant 0 : index
    %c0_1 = arith.constant 0 : index
    %0 = vector.load %arg1[%c0, %c0_0, %c0_1] : memref<1x8x32xf32, #tpu.memory_space<vmem>>, vector<1x8x32xf32>
    %1 = vector.shape_cast %0 : vector<1x8x32xf32> to vector<8x32xf32>
    %c0_2 = arith.constant 0 : index
    %c0_3 = arith.constant 0 : index
    %c0_4 = arith.constant 0 : index
    %2 = vector.load %arg2[%c0_2, %c0_3, %c0_4] : memref<1x8x32xf32, #tpu.memory_space<vmem>>, vector<1x8x32xf32>
    %3 = vector.shape_cast %2 : vector<1x8x32xf32> to vector<8x32xf32>
    %c0_5 = arith.constant 0 : index
    %c0_6 = arith.constant 0 : index
    %c0_7 = arith.constant 0 : index
    %4 = vector.load %arg3[%c0_5, %c0_6, %c0_7] : memref<1x8x32xf32, #tpu.memory_space<vmem>>, vector<1x8x32xf32>
    %5 = vector.shape_cast %4 : vector<1x8x32xf32> to vector<8x32xf32>
    %c0_8 = arith.constant 0 : index
    %c0_9 = arith.constant 0 : index
    %6 = vector.load %arg4[%c0_8, %c0_9] : memref<96x32xf32, #tpu.memory_space<vmem>>, vector<32x32xf32>
    %c32 = arith.constant 32 : index
    %c0_10 = arith.constant 0 : index
    %7 = vector.load %arg4[%c32, %c0_10] : memref<96x32xf32, #tpu.memory_space<vmem>>, vector<32x32xf32>
    %c64 = arith.constant 64 : index
    %c0_11 = arith.constant 0 : index
    %8 = vector.load %arg4[%c64, %c0_11] : memref<96x32xf32, #tpu.memory_space<vmem>>, vector<32x32xf32>
    %c0_12 = arith.constant 0 : index
    %c0_13 = arith.constant 0 : index
    %9 = vector.load %arg5[%c0_12, %c0_13] : memref<3x32xf32, #tpu.memory_space<vmem>>, vector<1x32xf32>
    %c1 = arith.constant 1 : index
    %c0_14 = arith.constant 0 : index
    %10 = vector.load %arg5[%c1, %c0_14] : memref<3x32xf32, #tpu.memory_space<vmem>>, vector<1x32xf32>
    %c2 = arith.constant 2 : index
    %c0_15 = arith.constant 0 : index
    %11 = vector.load %arg5[%c2, %c0_15] : memref<3x32xf32, #tpu.memory_space<vmem>>, vector<1x32xf32>
    %cst = arith.constant dense<0.000000e+00> : vector<8x32xf32>
    %12 = tpu.matmul %1, %6, %cst {dimension_numbers = #tpu.dot_dimension_numbers<[1], [1], [0], [0], [0, 0, 1, 0], [], []>} : vector<8x32xf32>, vector<32x32xf32>, vector<8x32xf32> -> vector<8x32xf32>
    %13 = vector.broadcast %9 : vector<1x32xf32> to vector<8x32xf32>
    %14 = arith.addf %12, %13 : vector<8x32xf32>
    %cst_16 = arith.constant dense<0.000000e+00> : vector<8x32xf32>
    %15 = tpu.matmul %3, %7, %cst_16 {dimension_numbers = #tpu.dot_dimension_numbers<[1], [1], [0], [0], [0, 0, 1, 0], [], []>} : vector<8x32xf32>, vector<32x32xf32>, vector<8x32xf32> -> vector<8x32xf32>
    %16 = vector.broadcast %10 : vector<1x32xf32> to vector<8x32xf32>
    %17 = arith.addf %15, %16 : vector<8x32xf32>
    %cst_17 = arith.constant dense<0.000000e+00> : vector<8x32xf32>
    %18 = tpu.matmul %5, %8, %cst_17 {dimension_numbers = #tpu.dot_dimension_numbers<[1], [1], [0], [0], [0, 0, 1, 0], [], []>} : vector<8x32xf32>, vector<32x32xf32>, vector<8x32xf32> -> vector<8x32xf32>
    %19 = vector.broadcast %11 : vector<1x32xf32> to vector<8x32xf32>
    %20 = arith.addf %18, %19 : vector<8x32xf32>
    %21 = vector.extract_strided_slice %14 {offsets = [0, 0], sizes = [8, 4], strides = [1, 1]} : vector<8x32xf32> to vector<8x4xf32>
    %cst_18 = arith.constant 5.000000e-01 : f32
    %22 = vector.broadcast %cst_18 : f32 to vector<8x4xf32>
    %23 = arith.mulf %21, %22 : vector<8x4xf32>
    %24 = vector.extract_strided_slice %17 {offsets = [0, 0], sizes = [8, 4], strides = [1, 1]} : vector<8x32xf32> to vector<8x4xf32>
    %25 = vector.extract_strided_slice %20 {offsets = [0, 0], sizes = [8, 4], strides = [1, 1]} : vector<8x32xf32> to vector<8x4xf32>
    %cst_19 = arith.constant dense<0.000000e+00> : vector<8x8xf32>
    %26 = tpu.matmul %23, %24, %cst_19 {dimension_numbers = #tpu.dot_dimension_numbers<[1], [1], [0], [0], [0, 0, 1, 0], [], []>} : vector<8x4xf32>, vector<8x4xf32>, vector<8x8xf32> -> vector<8x8xf32>
    %cst_20 = arith.constant dense<0xFF800000> : vector<8xf32>
    %27 = vector.multi_reduction <maximumf>, %26, %cst_20 [1] : vector<8x8xf32> to vector<8xf32>
    %28 = vector.shape_cast %27 : vector<8xf32> to vector<8x1xf32>
    %29 = vector.broadcast %28 : vector<8x1xf32> to vector<8x8xf32>
    %30 = arith.subf %26, %29 : vector<8x8xf32>
    %31 = math.exp %30 : vector<8x8xf32>
    %cst_21 = arith.constant dense<0.000000e+00> : vector<8xf32>
    %32 = vector.multi_reduction <add>, %31, %cst_21 [1] : vector<8x8xf32> to vector<8xf32>
    %33 = vector.shape_cast %32 : vector<8xf32> to vector<8x1xf32>
    %34 = tpu.reciprocal %33 : vector<8x1xf32> -> vector<8x1xf32>
    %35 = vector.broadcast %34 : vector<8x1xf32> to vector<8x8xf32>
    %36 = arith.mulf %31, %35 : vector<8x8xf32>
    %cst_22 = arith.constant dense<0.000000e+00> : vector<8x4xf32>
    %37 = tpu.matmul %36, %25, %cst_22 {dimension_numbers = #tpu.dot_dimension_numbers<[1], [0], [0], [1], [0, 0, 1, 1], [], []>} : vector<8x8xf32>, vector<8x4xf32>, vector<8x4xf32> -> vector<8x4xf32>
    %38 = vector.extract_strided_slice %14 {offsets = [0, 4], sizes = [8, 4], strides = [1, 1]} : vector<8x32xf32> to vector<8x4xf32>
    %cst_23 = arith.constant 5.000000e-01 : f32
    %39 = vector.broadcast %cst_23 : f32 to vector<8x4xf32>
    %40 = arith.mulf %38, %39 : vector<8x4xf32>
    %41 = vector.extract_strided_slice %17 {offsets = [0, 4], sizes = [8, 4], strides = [1, 1]} : vector<8x32xf32> to vector<8x4xf32>
    %42 = vector.extract_strided_slice %20 {offsets = [0, 4], sizes = [8, 4], strides = [1, 1]} : vector<8x32xf32> to vector<8x4xf32>
    %cst_24 = arith.constant dense<0.000000e+00> : vector<8x8xf32>
    %43 = tpu.matmul %40, %41, %cst_24 {dimension_numbers = #tpu.dot_dimension_numbers<[1], [1], [0], [0], [0, 0, 1, 0], [], []>} : vector<8x4xf32>, vector<8x4xf32>, vector<8x8xf32> -> vector<8x8xf32>
    %cst_25 = arith.constant dense<0xFF800000> : vector<8xf32>
    %44 = vector.multi_reduction <maximumf>, %43, %cst_25 [1] : vector<8x8xf32> to vector<8xf32>
    %45 = vector.shape_cast %44 : vector<8xf32> to vector<8x1xf32>
    %46 = vector.broadcast %45 : vector<8x1xf32> to vector<8x8xf32>
    %47 = arith.subf %43, %46 : vector<8x8xf32>
    %48 = math.exp %47 : vector<8x8xf32>
    %cst_26 = arith.constant dense<0.000000e+00> : vector<8xf32>
    %49 = vector.multi_reduction <add>, %48, %cst_26 [1] : vector<8x8xf32> to vector<8xf32>
    %50 = vector.shape_cast %49 : vector<8xf32> to vector<8x1xf32>
    %51 = tpu.reciprocal %50 : vector<8x1xf32> -> vector<8x1xf32>
    %52 = vector.broadcast %51 : vector<8x1xf32> to vector<8x8xf32>
    %53 = arith.mulf %48, %52 : vector<8x8xf32>
    %54 = arith.addf %36, %53 : vector<8x8xf32>
    %cst_27 = arith.constant dense<0.000000e+00> : vector<8x4xf32>
    %55 = tpu.matmul %53, %42, %cst_27 {dimension_numbers = #tpu.dot_dimension_numbers<[1], [0], [0], [1], [0, 0, 1, 1], [], []>} : vector<8x8xf32>, vector<8x4xf32>, vector<8x4xf32> -> vector<8x4xf32>
    %56 = vector.extract_strided_slice %14 {offsets = [0, 8], sizes = [8, 4], strides = [1, 1]} : vector<8x32xf32> to vector<8x4xf32>
    %cst_28 = arith.constant 5.000000e-01 : f32
    %57 = vector.broadcast %cst_28 : f32 to vector<8x4xf32>
    %58 = arith.mulf %56, %57 : vector<8x4xf32>
    %59 = vector.extract_strided_slice %17 {offsets = [0, 8], sizes = [8, 4], strides = [1, 1]} : vector<8x32xf32> to vector<8x4xf32>
    %60 = vector.extract_strided_slice %20 {offsets = [0, 8], sizes = [8, 4], strides = [1, 1]} : vector<8x32xf32> to vector<8x4xf32>
    %cst_29 = arith.constant dense<0.000000e+00> : vector<8x8xf32>
    %61 = tpu.matmul %58, %59, %cst_29 {dimension_numbers = #tpu.dot_dimension_numbers<[1], [1], [0], [0], [0, 0, 1, 0], [], []>} : vector<8x4xf32>, vector<8x4xf32>, vector<8x8xf32> -> vector<8x8xf32>
    %cst_30 = arith.constant dense<0xFF800000> : vector<8xf32>
    %62 = vector.multi_reduction <maximumf>, %61, %cst_30 [1] : vector<8x8xf32> to vector<8xf32>
    %63 = vector.shape_cast %62 : vector<8xf32> to vector<8x1xf32>
    %64 = vector.broadcast %63 : vector<8x1xf32> to vector<8x8xf32>
    %65 = arith.subf %61, %64 : vector<8x8xf32>
    %66 = math.exp %65 : vector<8x8xf32>
    %cst_31 = arith.constant dense<0.000000e+00> : vector<8xf32>
    %67 = vector.multi_reduction <add>, %66, %cst_31 [1] : vector<8x8xf32> to vector<8xf32>
    %68 = vector.shape_cast %67 : vector<8xf32> to vector<8x1xf32>
    %69 = tpu.reciprocal %68 : vector<8x1xf32> -> vector<8x1xf32>
    %70 = vector.broadcast %69 : vector<8x1xf32> to vector<8x8xf32>
    %71 = arith.mulf %66, %70 : vector<8x8xf32>
    %72 = arith.addf %54, %71 : vector<8x8xf32>
    %cst_32 = arith.constant dense<0.000000e+00> : vector<8x4xf32>
    %73 = tpu.matmul %71, %60, %cst_32 {dimension_numbers = #tpu.dot_dimension_numbers<[1], [0], [0], [1], [0, 0, 1, 1], [], []>} : vector<8x8xf32>, vector<8x4xf32>, vector<8x4xf32> -> vector<8x4xf32>
    %74 = vector.extract_strided_slice %14 {offsets = [0, 12], sizes = [8, 4], strides = [1, 1]} : vector<8x32xf32> to vector<8x4xf32>
    %cst_33 = arith.constant 5.000000e-01 : f32
    %75 = vector.broadcast %cst_33 : f32 to vector<8x4xf32>
    %76 = arith.mulf %74, %75 : vector<8x4xf32>
    %77 = vector.extract_strided_slice %17 {offsets = [0, 12], sizes = [8, 4], strides = [1, 1]} : vector<8x32xf32> to vector<8x4xf32>
    %78 = vector.extract_strided_slice %20 {offsets = [0, 12], sizes = [8, 4], strides = [1, 1]} : vector<8x32xf32> to vector<8x4xf32>
    %cst_34 = arith.constant dense<0.000000e+00> : vector<8x8xf32>
    %79 = tpu.matmul %76, %77, %cst_34 {dimension_numbers = #tpu.dot_dimension_numbers<[1], [1], [0], [0], [0, 0, 1, 0], [], []>} : vector<8x4xf32>, vector<8x4xf32>, vector<8x8xf32> -> vector<8x8xf32>
    %cst_35 = arith.constant dense<0xFF800000> : vector<8xf32>
    %80 = vector.multi_reduction <maximumf>, %79, %cst_35 [1] : vector<8x8xf32> to vector<8xf32>
    %81 = vector.shape_cast %80 : vector<8xf32> to vector<8x1xf32>
    %82 = vector.broadcast %81 : vector<8x1xf32> to vector<8x8xf32>
    %83 = arith.subf %79, %82 : vector<8x8xf32>
    %84 = math.exp %83 : vector<8x8xf32>
    %cst_36 = arith.constant dense<0.000000e+00> : vector<8xf32>
    %85 = vector.multi_reduction <add>, %84, %cst_36 [1] : vector<8x8xf32> to vector<8xf32>
    %86 = vector.shape_cast %85 : vector<8xf32> to vector<8x1xf32>
    %87 = tpu.reciprocal %86 : vector<8x1xf32> -> vector<8x1xf32>
    %88 = vector.broadcast %87 : vector<8x1xf32> to vector<8x8xf32>
    %89 = arith.mulf %84, %88 : vector<8x8xf32>
    %90 = arith.addf %72, %89 : vector<8x8xf32>
    %cst_37 = arith.constant dense<0.000000e+00> : vector<8x4xf32>
    %91 = tpu.matmul %89, %78, %cst_37 {dimension_numbers = #tpu.dot_dimension_numbers<[1], [0], [0], [1], [0, 0, 1, 1], [], []>} : vector<8x8xf32>, vector<8x4xf32>, vector<8x4xf32> -> vector<8x4xf32>
    %92 = vector.extract_strided_slice %14 {offsets = [0, 16], sizes = [8, 4], strides = [1, 1]} : vector<8x32xf32> to vector<8x4xf32>
    %cst_38 = arith.constant 5.000000e-01 : f32
    %93 = vector.broadcast %cst_38 : f32 to vector<8x4xf32>
    %94 = arith.mulf %92, %93 : vector<8x4xf32>
    %95 = vector.extract_strided_slice %17 {offsets = [0, 16], sizes = [8, 4], strides = [1, 1]} : vector<8x32xf32> to vector<8x4xf32>
    %96 = vector.extract_strided_slice %20 {offsets = [0, 16], sizes = [8, 4], strides = [1, 1]} : vector<8x32xf32> to vector<8x4xf32>
    %cst_39 = arith.constant dense<0.000000e+00> : vector<8x8xf32>
    %97 = tpu.matmul %94, %95, %cst_39 {dimension_numbers = #tpu.dot_dimension_numbers<[1], [1], [0], [0], [0, 0, 1, 0], [], []>} : vector<8x4xf32>, vector<8x4xf32>, vector<8x8xf32> -> vector<8x8xf32>
    %cst_40 = arith.constant dense<0xFF800000> : vector<8xf32>
    %98 = vector.multi_reduction <maximumf>, %97, %cst_40 [1] : vector<8x8xf32> to vector<8xf32>
    %99 = vector.shape_cast %98 : vector<8xf32> to vector<8x1xf32>
    %100 = vector.broadcast %99 : vector<8x1xf32> to vector<8x8xf32>
    %101 = arith.subf %97, %100 : vector<8x8xf32>
    %102 = math.exp %101 : vector<8x8xf32>
    %cst_41 = arith.constant dense<0.000000e+00> : vector<8xf32>
    %103 = vector.multi_reduction <add>, %102, %cst_41 [1] : vector<8x8xf32> to vector<8xf32>
    %104 = vector.shape_cast %103 : vector<8xf32> to vector<8x1xf32>
    %105 = tpu.reciprocal %104 : vector<8x1xf32> -> vector<8x1xf32>
    %106 = vector.broadcast %105 : vector<8x1xf32> to vector<8x8xf32>
    %107 = arith.mulf %102, %106 : vector<8x8xf32>
    %108 = arith.addf %90, %107 : vector<8x8xf32>
    %cst_42 = arith.constant dense<0.000000e+00> : vector<8x4xf32>
    %109 = tpu.matmul %107, %96, %cst_42 {dimension_numbers = #tpu.dot_dimension_numbers<[1], [0], [0], [1], [0, 0, 1, 1], [], []>} : vector<8x8xf32>, vector<8x4xf32>, vector<8x4xf32> -> vector<8x4xf32>
    %110 = vector.extract_strided_slice %14 {offsets = [0, 20], sizes = [8, 4], strides = [1, 1]} : vector<8x32xf32> to vector<8x4xf32>
    %cst_43 = arith.constant 5.000000e-01 : f32
    %111 = vector.broadcast %cst_43 : f32 to vector<8x4xf32>
    %112 = arith.mulf %110, %111 : vector<8x4xf32>
    %113 = vector.extract_strided_slice %17 {offsets = [0, 20], sizes = [8, 4], strides = [1, 1]} : vector<8x32xf32> to vector<8x4xf32>
    %114 = vector.extract_strided_slice %20 {offsets = [0, 20], sizes = [8, 4], strides = [1, 1]} : vector<8x32xf32> to vector<8x4xf32>
    %cst_44 = arith.constant dense<0.000000e+00> : vector<8x8xf32>
    %115 = tpu.matmul %112, %113, %cst_44 {dimension_numbers = #tpu.dot_dimension_numbers<[1], [1], [0], [0], [0, 0, 1, 0], [], []>} : vector<8x4xf32>, vector<8x4xf32>, vector<8x8xf32> -> vector<8x8xf32>
    %cst_45 = arith.constant dense<0xFF800000> : vector<8xf32>
    %116 = vector.multi_reduction <maximumf>, %115, %cst_45 [1] : vector<8x8xf32> to vector<8xf32>
    %117 = vector.shape_cast %116 : vector<8xf32> to vector<8x1xf32>
    %118 = vector.broadcast %117 : vector<8x1xf32> to vector<8x8xf32>
    %119 = arith.subf %115, %118 : vector<8x8xf32>
    %120 = math.exp %119 : vector<8x8xf32>
    %cst_46 = arith.constant dense<0.000000e+00> : vector<8xf32>
    %121 = vector.multi_reduction <add>, %120, %cst_46 [1] : vector<8x8xf32> to vector<8xf32>
    %122 = vector.shape_cast %121 : vector<8xf32> to vector<8x1xf32>
    %123 = tpu.reciprocal %122 : vector<8x1xf32> -> vector<8x1xf32>
    %124 = vector.broadcast %123 : vector<8x1xf32> to vector<8x8xf32>
    %125 = arith.mulf %120, %124 : vector<8x8xf32>
    %126 = arith.addf %108, %125 : vector<8x8xf32>
    %cst_47 = arith.constant dense<0.000000e+00> : vector<8x4xf32>
    %127 = tpu.matmul %125, %114, %cst_47 {dimension_numbers = #tpu.dot_dimension_numbers<[1], [0], [0], [1], [0, 0, 1, 1], [], []>} : vector<8x8xf32>, vector<8x4xf32>, vector<8x4xf32> -> vector<8x4xf32>
    %128 = vector.extract_strided_slice %14 {offsets = [0, 24], sizes = [8, 4], strides = [1, 1]} : vector<8x32xf32> to vector<8x4xf32>
    %cst_48 = arith.constant 5.000000e-01 : f32
    %129 = vector.broadcast %cst_48 : f32 to vector<8x4xf32>
    %130 = arith.mulf %128, %129 : vector<8x4xf32>
    %131 = vector.extract_strided_slice %17 {offsets = [0, 24], sizes = [8, 4], strides = [1, 1]} : vector<8x32xf32> to vector<8x4xf32>
    %132 = vector.extract_strided_slice %20 {offsets = [0, 24], sizes = [8, 4], strides = [1, 1]} : vector<8x32xf32> to vector<8x4xf32>
    %cst_49 = arith.constant dense<0.000000e+00> : vector<8x8xf32>
    %133 = tpu.matmul %130, %131, %cst_49 {dimension_numbers = #tpu.dot_dimension_numbers<[1], [1], [0], [0], [0, 0, 1, 0], [], []>} : vector<8x4xf32>, vector<8x4xf32>, vector<8x8xf32> -> vector<8x8xf32>
    %cst_50 = arith.constant dense<0xFF800000> : vector<8xf32>
    %134 = vector.multi_reduction <maximumf>, %133, %cst_50 [1] : vector<8x8xf32> to vector<8xf32>
    %135 = vector.shape_cast %134 : vector<8xf32> to vector<8x1xf32>
    %136 = vector.broadcast %135 : vector<8x1xf32> to vector<8x8xf32>
    %137 = arith.subf %133, %136 : vector<8x8xf32>
    %138 = math.exp %137 : vector<8x8xf32>
    %cst_51 = arith.constant dense<0.000000e+00> : vector<8xf32>
    %139 = vector.multi_reduction <add>, %138, %cst_51 [1] : vector<8x8xf32> to vector<8xf32>
    %140 = vector.shape_cast %139 : vector<8xf32> to vector<8x1xf32>
    %141 = tpu.reciprocal %140 : vector<8x1xf32> -> vector<8x1xf32>
    %142 = vector.broadcast %141 : vector<8x1xf32> to vector<8x8xf32>
    %143 = arith.mulf %138, %142 : vector<8x8xf32>
    %144 = arith.addf %126, %143 : vector<8x8xf32>
    %cst_52 = arith.constant dense<0.000000e+00> : vector<8x4xf32>
    %145 = tpu.matmul %143, %132, %cst_52 {dimension_numbers = #tpu.dot_dimension_numbers<[1], [0], [0], [1], [0, 0, 1, 1], [], []>} : vector<8x8xf32>, vector<8x4xf32>, vector<8x4xf32> -> vector<8x4xf32>
    %146 = vector.extract_strided_slice %14 {offsets = [0, 28], sizes = [8, 4], strides = [1, 1]} : vector<8x32xf32> to vector<8x4xf32>
    %cst_53 = arith.constant 5.000000e-01 : f32
    %147 = vector.broadcast %cst_53 : f32 to vector<8x4xf32>
    %148 = arith.mulf %146, %147 : vector<8x4xf32>
    %149 = vector.extract_strided_slice %17 {offsets = [0, 28], sizes = [8, 4], strides = [1, 1]} : vector<8x32xf32> to vector<8x4xf32>
    %150 = vector.extract_strided_slice %20 {offsets = [0, 28], sizes = [8, 4], strides = [1, 1]} : vector<8x32xf32> to vector<8x4xf32>
    %cst_54 = arith.constant dense<0.000000e+00> : vector<8x8xf32>
    %151 = tpu.matmul %148, %149, %cst_54 {dimension_numbers = #tpu.dot_dimension_numbers<[1], [1], [0], [0], [0, 0, 1, 0], [], []>} : vector<8x4xf32>, vector<8x4xf32>, vector<8x8xf32> -> vector<8x8xf32>
    %cst_55 = arith.constant dense<0xFF800000> : vector<8xf32>
    %152 = vector.multi_reduction <maximumf>, %151, %cst_55 [1] : vector<8x8xf32> to vector<8xf32>
    %153 = vector.shape_cast %152 : vector<8xf32> to vector<8x1xf32>
    %154 = vector.broadcast %153 : vector<8x1xf32> to vector<8x8xf32>
    %155 = arith.subf %151, %154 : vector<8x8xf32>
    %156 = math.exp %155 : vector<8x8xf32>
    %cst_56 = arith.constant dense<0.000000e+00> : vector<8xf32>
    %157 = vector.multi_reduction <add>, %156, %cst_56 [1] : vector<8x8xf32> to vector<8xf32>
    %158 = vector.shape_cast %157 : vector<8xf32> to vector<8x1xf32>
    %159 = tpu.reciprocal %158 : vector<8x1xf32> -> vector<8x1xf32>
    %160 = vector.broadcast %159 : vector<8x1xf32> to vector<8x8xf32>
    %161 = arith.mulf %156, %160 : vector<8x8xf32>
    %162 = arith.addf %144, %161 : vector<8x8xf32>
    %cst_57 = arith.constant dense<0.000000e+00> : vector<8x4xf32>
    %163 = tpu.matmul %161, %150, %cst_57 {dimension_numbers = #tpu.dot_dimension_numbers<[1], [0], [0], [1], [0, 0, 1, 1], [], []>} : vector<8x8xf32>, vector<8x4xf32>, vector<8x4xf32> -> vector<8x4xf32>
    %164 = tpu.concatenate %37, %55, %73, %91, %109, %127, %145, %163 in 1 : vector<8x4xf32>, vector<8x4xf32>, vector<8x4xf32>, vector<8x4xf32>, vector<8x4xf32>, vector<8x4xf32>, vector<8x4xf32>, vector<8x4xf32> -> vector<8x32xf32>
    %c0_58 = arith.constant 0 : index
    %c0_59 = arith.constant 0 : index
    %165 = vector.load %arg6[%c0_58, %c0_59] : memref<32x32xf32, #tpu.memory_space<vmem>>, vector<32x32xf32>
    %cst_60 = arith.constant dense<0.000000e+00> : vector<8x32xf32>
    %166 = tpu.matmul %164, %165, %cst_60 {dimension_numbers = #tpu.dot_dimension_numbers<[1], [1], [0], [0], [0, 0, 1, 0], [], []>} : vector<8x32xf32>, vector<32x32xf32>, vector<8x32xf32> -> vector<8x32xf32>
    %c0_61 = arith.constant 0 : index
    %c0_62 = arith.constant 0 : index
    %167 = vector.load %arg7[%c0_61, %c0_62] : memref<1x32xf32, #tpu.memory_space<vmem>>, vector<1x32xf32>
    %168 = vector.broadcast %167 : vector<1x32xf32> to vector<8x32xf32>
    %169 = arith.addf %166, %168 : vector<8x32xf32>
    %c0_63 = arith.constant 0 : index
    %c0_64 = arith.constant 0 : index
    %c0_65 = arith.constant 0 : index
    %170 = vector.load %arg8[%c0_63, %c0_64, %c0_65] : memref<1x8x32xf32, #tpu.memory_space<vmem>>, vector<1x8x32xf32>
    %171 = vector.shape_cast %170 : vector<1x8x32xf32> to vector<8x32xf32>
    %172 = vector.shape_cast %169 : vector<8x32xf32> to vector<1x8x32xf32>
    tpu.vector_store %arg8[%c0_63, %c0_64, %c0_65], %172 {strides = array<i32>} : memref<1x8x32xf32, #tpu.memory_space<vmem>>, vector<1x8x32xf32>,
    %cst_66 = arith.constant 1.250000e-01 : f32
    %173 = vector.broadcast %cst_66 : f32 to vector<8x8xf32>
    %174 = arith.mulf %162, %173 : vector<8x8xf32>
    %c0_67 = arith.constant 0 : index
    %c0_68 = arith.constant 0 : index
    %c0_69 = arith.constant 0 : index
    %175 = vector.load %arg9[%c0_67, %c0_68, %c0_69] : memref<1x8x8xf32, #tpu.memory_space<vmem>>, vector<1x8x8xf32>
    %176 = vector.shape_cast %175 : vector<1x8x8xf32> to vector<8x8xf32>
    %177 = vector.shape_cast %174 : vector<8x8xf32> to vector<1x8x8xf32>
    tpu.vector_store %arg9[%c0_67, %c0_68, %c0_69], %177 {strides = array<i32>} : memref<1x8x8xf32, #tpu.memory_space<vmem>>, vector<1x8x8xf32>,
    return
  }
  func.func @transform_0(%arg0: i32) -> (i32, i32, i32) {
    %c0_i32 = arith.constant 0 : i32
    %c0_i32_0 = arith.constant 0 : i32
    %c0_i32_1 = arith.constant 0 : i32
    return %arg0, %c0_i32, %c0_i32_0 : i32, i32, i32
  }
  func.func @transform_1(%arg0: i32) -> (i32, i32, i32) {
    %c0_i32 = arith.constant 0 : i32
    %c0_i32_0 = arith.constant 0 : i32
    %c0_i32_1 = arith.constant 0 : i32
    return %arg0, %c0_i32, %c0_i32_0 : i32, i32, i32
  }
  func.func @transform_2(%arg0: i32) -> (i32, i32, i32) {
    %c0_i32 = arith.constant 0 : i32
    %c0_i32_0 = arith.constant 0 : i32
    %c0_i32_1 = arith.constant 0 : i32
    return %arg0, %c0_i32, %c0_i32_0 : i32, i32, i32
  }
  func.func @transform_3(%arg0: i32) -> (i32, i32) {
    %c0_i32 = arith.constant 0 : i32
    %c0_i32_0 = arith.constant 0 : i32
    %c0_i32_1 = arith.constant 0 : i32
    return %c0_i32, %c0_i32_0 : i32, i32
  }
  func.func @transform_4(%arg0: i32) -> (i32, i32) {
    %c0_i32 = arith.constant 0 : i32
    %c0_i32_0 = arith.constant 0 : i32
    %c0_i32_1 = arith.constant 0 : i32
    return %c0_i32, %c0_i32_0 : i32, i32
  }
  func.func @transform_5(%arg0: i32) -> (i32, i32) {
    %c0_i32 = arith.constant 0 : i32
    %c0_i32_0 = arith.constant 0 : i32
    %c0_i32_1 = arith.constant 0 : i32
    return %c0_i32, %c0_i32_0 : i32, i32
  }
  func.func @transform_6(%arg0: i32) -> (i32, i32) {
    %c0_i32 = arith.constant 0 : i32
    %c0_i32_0 = arith.constant 0 : i32
    %c0_i32_1 = arith.constant 0 : i32
    return %c0_i32, %c0_i32_0 : i32, i32
  }
  func.func @transform_7(%arg0: i32) -> (i32, i32, i32) {
    %c0_i32 = arith.constant 0 : i32
    %c0_i32_0 = arith.constant 0 : i32
    %c0_i32_1 = arith.constant 0 : i32
    return %arg0, %c0_i32, %c0_i32_0 : i32, i32, i32
  }
  func.func @transform_8(%arg0: i32) -> (i32, i32, i32) {
    %c0_i32 = arith.constant 0 : i32
    %c0_i32_0 = arith.constant 0 : i32
    %c0_i32_1 = arith.constant 0 : i32
    return %arg0, %c0_i32, %c0_i32_0 : i32, i32, i32
  }
}

</mosaic_0001>

<llo_original>
// kernel: mha_forward.1
$region0: #{mha_forward.1}
  #allocation0 [shape = 'u32[]', space=smem, size = 0x4, offset = 0x4, fixed_abs, tag = 'smem constant byte address 0x4 - core index']
  #allocation1 [shape = 'u32[144,128]{1,0:T(1,128)}', space=vmem, size = 0x12000, scoped, tag = 'internal scratch']
  %s0 = inlined_call_operand.vmem [shape: f32[2,8,32], index: 0, kind: input, shape index: {}]
  %s1 = inlined_call_operand.vmem [shape: f32[2,8,32], index: 1, kind: input, shape index: {}]
  %s2 = inlined_call_operand.vmem [shape: f32[2,8,32], index: 2, kind: input, shape index: {}]
  %s3 = inlined_call_operand.vmem [shape: f32[96,32], index: 3, kind: input, shape index: {}]
  %s4 = inlined_call_operand.vmem [shape: f32[3,32], index: 4, kind: input, shape index: {}]
  %s5 = inlined_call_operand.vmem [shape: f32[32,32], index: 5, kind: input, shape index: {}]
  %s6 = inlined_call_operand.vmem [shape: f32[1,32], index: 6, kind: input, shape index: {}]
  %s7 = inlined_call_operand.vmem [shape: f32[2,8,32], index: 7, kind: output, shape index: {0}]
  %s8 = inlined_call_operand.hbm [shape: f32[2,8,8], index: 8, kind: output, shape index: {1}]
  %9 = xla_tuple %s7, %s8
  %s10 = sld [smem:[#allocation0]]
  $region69: #{mha_forward.1} parent=0
    _
  %s12 = ssub.s32 1, %s10
  %s13 = scalar_select 0, %s12, %s10
  $region1: #{mha_forward.1} parent=0
    #allocation2 [shape = 'u8[8192]{0}', space=vmem, size = 0x2000, scoped, tag = 'output window, operand 1']
    #allocation3 [shape = 's32[2]{0}', space=sflag, size = 0x8, scoped, tag = 'scoped memory for mha_forward.1']
    %14 = vsyncpa [#allocation3], 0
    %s15 = scalar_lea.sflag [#allocation3], 1
    %16 = vsyncpa %s15, 0
    loop: start=0, step=1, limit=4
    $region2: #{mha_forward.1} parent=1 // loop_pre_header
      _
    $region3: #{mha_forward.1} parent=1 // loop_header
      %s18 = sphi 0, %s22
      %p19 = scmp.ge.s32.totalorder %s18, 4
      %s28 = sphi 0, %s30
      %s31 = sphi 0, %s28
      %s32 = sphi 0, %s31
      %s48 = sphi 0, %s32
      %s54 = sphi 0, %s56
      %s57 = sphi 0, %s54
      %s58 = sphi 0, %s57
      %s74 = sphi 0, %s58
      %s80 = sphi 0, %s82
      %s83 = sphi 0, %s80
      %s84 = sphi 0, %s83
      %s100 = sphi 0, %s84
      %s104 = sphi 0, %s104
      %s106 = sphi 0, %s104
      %s107 = sphi 0, %s106
      %s121 = sphi 0, %s107
      %s125 = sphi 0, %s125
      %s127 = sphi 0, %s125
      %s128 = sphi 0, %s127
      %s142 = sphi 0, %s128
      %s146 = sphi 0, %s146
      %s148 = sphi 0, %s146
      %s149 = sphi 0, %s148
      %s163 = sphi 0, %s149
      %s167 = sphi 0, %s167
      %s169 = sphi 0, %s167
      %s170 = sphi 0, %s169
      %s184 = sphi 0, %s170
      %s190 = sphi 0, %s192
      %s193 = sphi 0, %s190
      %s194 = sphi 0, %s193
      %s210 = sphi 0, %s194
      %s216 = sphi 0, %s218
      %s219 = sphi 0, %s216
      %s220 = sphi 0, %s219
      %s236 = sphi 0, %s220
    $region4: #{mha_forward.1} parent=1 // loop_header_branch
      %21 = sbr.rel (%p19) target = $region8
    $region5: #{mha_forward.1} parent=1 // loop_body
      %s23 = ssub.s32 %s18, 1
      %s24 = ssub.s32 %s18, 2
      %s25 = sadd.s32 %s18, 1
      %s26 = ssub.s32 %s18, %s25
      %p27 = scmp.eq.s32.totalorder %s26, 0
      %s29 = sadd.s32 %s28, 1
      %s30 = scalar_select %p27, %s28, %s29
      %p33 = pneg %p27
      %p34 = scmp.eq.s32.totalorder %s18, 1
      %p35 = por %p33, %p34
      %p36 = scmp.ne.s32.totalorder %s28, %s31
      %p37 = scmp.eq.s32.totalorder %s18, 0
      %p38 = por %p36, %p37
      %p39 = scmp.ne.s32.totalorder %s28, %s31
      %p40 = scmp.eq.s32.totalorder %s23, 1
      %p41 = por %p39, %p40
      %p42 = scmp.ne.s32.totalorder %s31, %s32
      %p43 = scmp.eq.s32.totalorder %s23, 0
      %p44 = por %p42, %p43
      %p45 = scmp.ne.s32.totalorder %s31, %s32
      %p46 = scmp.eq.s32.totalorder %s24, 1
      %p47 = por %p45, %p46
      %p49 = scmp.ne.s32.totalorder %s32, %s48
      %p50 = scmp.eq.s32.totalorder %s24, 0
      %p51 = por %p49, %p50
      %s52 = ssub.s32 %s18, %s25
      %p53 = scmp.eq.s32.totalorder %s52, 0
      %s55 = sadd.s32 %s54, 1
      %s56 = scalar_select %p53, %s54, %s55
      %p59 = pneg %p53
      %p60 = scmp.eq.s32.totalorder %s18, 1
      %p61 = por %p59, %p60
      %p62 = scmp.ne.s32.totalorder %s54, %s57
      %p63 = scmp.eq.s32.totalorder %s18, 0
      %p64 = por %p62, %p63
      %p65 = scmp.ne.s32.totalorder %s54, %s57
      %p66 = scmp.eq.s32.totalorder %s23, 1
      %p67 = por %p65, %p66
      %p68 = scmp.ne.s32.totalorder %s57, %s58
      %p69 = scmp.eq.s32.totalorder %s23, 0
      %p70 = por %p68, %p69
      %p71 = scmp.ne.s32.totalorder %s57, %s58
      %p72 = scmp.eq.s32.totalorder %s24, 1
      %p73 = por %p71, %p72
      %p75 = scmp.ne.s32.totalorder %s58, %s74
      %p76 = scmp.eq.s32.totalorder %s24, 0
      %p77 = por %p75, %p76
      %s78 = ssub.s32 %s18, %s25
      %p79 = scmp.eq.s32.totalorder %s78, 0
      %s81 = sadd.s32 %s80, 1
      %s82 = scalar_select %p79, %s80, %s81
      %p85 = pneg %p79
      %p86 = scmp.eq.s32.totalorder %s18, 1
      %p87 = por %p85, %p86
      %p88 = scmp.ne.s32.totalorder %s80, %s83
      %p89 = scmp.eq.s32.totalorder %s18, 0
      %p90 = por %p88, %p89
      %p91 = scmp.ne.s32.totalorder %s80, %s83
      %p92 = scmp.eq.s32.totalorder %s23, 1
      %p93 = por %p91, %p92
      %p94 = scmp.ne.s32.totalorder %s83, %s84
      %p95 = scmp.eq.s32.totalorder %s23, 0
      %p96 = por %p94, %p95
      %p97 = scmp.ne.s32.totalorder %s83, %s84
      %p98 = scmp.eq.s32.totalorder %s24, 1
      %p99 = por %p97, %p98
      %p101 = scmp.ne.s32.totalorder %s84, %s100
      %p102 = scmp.eq.s32.totalorder %s24, 0
      %p103 = por %p101, %p102
      %s105 = sadd.s32 %s104, 1
      %p108 = scmp.eq.s32.totalorder %s18, 1
      %p109 = scmp.ne.s32.totalorder %s104, %s106
      %p110 = scmp.eq.s32.totalorder %s18, 0
      %p111 = por %p109, %p110
      %p112 = scmp.ne.s32.totalorder %s104, %s106
      %p113 = scmp.eq.s32.totalorder %s23, 1
      %p114 = por %p112, %p113
      %p115 = scmp.ne.s32.totalorder %s106, %s107
      %p116 = scmp.eq.s32.totalorder %s23, 0
      %p117 = por %p115, %p116
      %p118 = scmp.ne.s32.totalorder %s106, %s107
      %p119 = scmp.eq.s32.totalorder %s24, 1
      %p120 = por %p118, %p119
      %p122 = scmp.ne.s32.totalorder %s107, %s121
      %p123 = scmp.eq.s32.totalorder %s24, 0
      %p124 = por %p122, %p123
      %s126 = sadd.s32 %s125, 1
      %p129 = scmp.eq.s32.totalorder %s18, 1
      %p130 = scmp.ne.s32.totalorder %s125, %s127
      %p131 = scmp.eq.s32.totalorder %s18, 0
      %p132 = por %p130, %p131
      %p133 = scmp.ne.s32.totalorder %s125, %s127
      %p134 = scmp.eq.s32.totalorder %s23, 1
      %p135 = por %p133, %p134
      %p136 = scmp.ne.s32.totalorder %s127, %s128
      %p137 = scmp.eq.s32.totalorder %s23, 0
      %p138 = por %p136, %p137
      %p139 = scmp.ne.s32.totalorder %s127, %s128
      %p140 = scmp.eq.s32.totalorder %s24, 1
      %p141 = por %p139, %p140
      %p143 = scmp.ne.s32.totalorder %s128, %s142
      %p144 = scmp.eq.s32.totalorder %s24, 0
      %p145 = por %p143, %p144
      %s147 = sadd.s32 %s146, 1
      %p150 = scmp.eq.s32.totalorder %s18, 1
      %p151 = scmp.ne.s32.totalorder %s146, %s148
      %p152 = scmp.eq.s32.totalorder %s18, 0
      %p153 = por %p151, %p152
      %p154 = scmp.ne.s32.totalorder %s146, %s148
      %p155 = scmp.eq.s32.totalorder %s23, 1
      %p156 = por %p154, %p155
      %p157 = scmp.ne.s32.totalorder %s148, %s149
      %p158 = scmp.eq.s32.totalorder %s23, 0
      %p159 = por %p157, %p158
      %p160 = scmp.ne.s32.totalorder %s148, %s149
      %p161 = scmp.eq.s32.totalorder %s24, 1
      %p162 = por %p160, %p161
      %p164 = scmp.ne.s32.totalorder %s149, %s163
      %p165 = scmp.eq.s32.totalorder %s24, 0
      %p166 = por %p164, %p165
      %s168 = sadd.s32 %s167, 1
      %p171 = scmp.eq.s32.totalorder %s18, 1
      %p172 = scmp.ne.s32.totalorder %s167, %s169
      %p173 = scmp.eq.s32.totalorder %s18, 0
      %p174 = por %p172, %p173
      %p175 = scmp.ne.s32.totalorder %s167, %s169
      %p176 = scmp.eq.s32.totalorder %s23, 1
      %p177 = por %p175, %p176
      %p178 = scmp.ne.s32.totalorder %s169, %s170
      %p179 = scmp.eq.s32.totalorder %s23, 0
      %p180 = por %p178, %p179
      %p181 = scmp.ne.s32.totalorder %s169, %s170
      %p182 = scmp.eq.s32.totalorder %s24, 1
      %p183 = por %p181, %p182
      %p185 = scmp.ne.s32.totalorder %s170, %s184
      %p186 = scmp.eq.s32.totalorder %s24, 0
      %p187 = por %p185, %p186
      %s188 = ssub.s32 %s18, %s25
      %p189 = scmp.eq.s32.totalorder %s188, 0
      %s191 = sadd.s32 %s190, 1
      %s192 = scalar_select %p189, %s190, %s191
      %p195 = pneg %p189
      %p196 = scmp.eq.s32.totalorder %s18, 1
      %p197 = por %p195, %p196
      %p198 = scmp.ne.s32.totalorder %s190, %s193
      %p199 = scmp.eq.s32.totalorder %s18, 0
      %p200 = por %p198, %p199
      %p201 = scmp.ne.s32.totalorder %s190, %s193
      %p202 = scmp.eq.s32.totalorder %s23, 1
      %p203 = por %p201, %p202
      %p204 = scmp.ne.s32.totalorder %s193, %s194
      %p205 = scmp.eq.s32.totalorder %s23, 0
      %p206 = por %p204, %p205
      %p207 = scmp.ne.s32.totalorder %s193, %s194
      %p208 = scmp.eq.s32.totalorder %s24, 1
      %p209 = por %p207, %p208
      %p211 = scmp.ne.s32.totalorder %s194, %s210
      %p212 = scmp.eq.s32.totalorder %s24, 0
      %p213 = por %p211, %p212
      %s214 = ssub.s32 %s18, %s25
      %p215 = scmp.eq.s32.totalorder %s214, 0
      %s217 = sadd.s32 %s216, 1
      %s218 = scalar_select %p215, %s216, %s217
      %p221 = pneg %p215
      %p222 = scmp.eq.s32.totalorder %s18, 1
      %p223 = por %p221, %p222
      %p224 = scmp.ne.s32.totalorder %s216, %s219
      %p225 = scmp.eq.s32.totalorder %s18, 0
      %p226 = por %p224, %p225
      %p227 = scmp.ne.s32.totalorder %s216, %s219
      %p228 = scmp.eq.s32.totalorder %s23, 1
      %p229 = por %p227, %p228
      %p230 = scmp.ne.s32.totalorder %s219, %s220
      %p231 = scmp.eq.s32.totalorder %s23, 0
      %p232 = por %p230, %p231
      %p233 = scmp.ne.s32.totalorder %s219, %s220
      %p234 = scmp.eq.s32.totalorder %s24, 1
      %p235 = por %p233, %p234
      %p237 = scmp.ne.s32.totalorder %s220, %s236
      %p238 = scmp.eq.s32.totalorder %s24, 0
      %p239 = por %p237, %p238
      %p240 = scmp.le.s32.totalorder 1, %s18
      %p241 = scmp.lt.s32.totalorder %s18, 3
      %p242 = pnand %p240, %p241
      %p243 = pneg %p242
      // Predicated region
      $region9: #{mha_forward.1} parent=5 // pred_check
        _
      $region10: #{mha_forward.1} parent=5 // pred_check_branch
        %245 = sbr.rel (%p242) target = $region12
      $region11: #{mha_forward.1} parent=5 // pred_region
        %s246 = ssub.s32 %s18, 1
        // Predicated region
        $region13: #{mha_forward.1} parent=11 // pred_check
          %p247 = pneg %p117
        $region14: #{mha_forward.1} parent=11 // pred_check_branch
          %249 = sbr.rel (%p247) target = $region16
        $region15: #{mha_forward.1} parent=11 // pred_region
          _
        $region16: #{mha_forward.1} parent=11 // pred_fallthru
          _
        // Predicated region
        $region17: #{mha_forward.1} parent=11 // pred_check
          %p250 = pneg %p138
        $region18: #{mha_forward.1} parent=11 // pred_check_branch
          %252 = sbr.rel (%p250) target = $region20
        $region19: #{mha_forward.1} parent=11 // pred_region
          _
        $region20: #{mha_forward.1} parent=11 // pred_fallthru
          _
        // Predicated region
        $region21: #{mha_forward.1} parent=11 // pred_check
          %p253 = pneg %p159
        $region22: #{mha_forward.1} parent=11 // pred_check_branch
          %255 = sbr.rel (%p253) target = $region24
        $region23: #{mha_forward.1} parent=11 // pred_region
          _
        $region24: #{mha_forward.1} parent=11 // pred_fallthru
          _
        // Predicated region
        $region25: #{mha_forward.1} parent=11 // pred_check
          %p256 = pneg %p180
        $region26: #{mha_forward.1} parent=11 // pred_check_branch
          %258 = sbr.rel (%p256) target = $region28
        $region27: #{mha_forward.1} parent=11 // pred_region
          _
        $region28: #{mha_forward.1} parent=11 // pred_fallthru
          _
      $region12: #{mha_forward.1} parent=5 // pred_fallthru
        _
      %p259 = scmp.lt.s32.totalorder %s18, 2
      // Predicated region
      $region29: #{mha_forward.1} parent=5 // pred_check
        %p260 = pneg %p259
      $region30: #{mha_forward.1} parent=5 // pred_check_branch
        %262 = sbr.rel (%p260) target = $region32
      $region31: #{mha_forward.1} parent=5 // pred_region
        // Predicated region
        $region33: #{mha_forward.1} parent=31 // pred_check
          %p263 = pneg %p38
        $region34: #{mha_forward.1} parent=31 // pred_check_branch
          %265 = sbr.rel (%p263) target = $region36
        $region35: #{mha_forward.1} parent=31 // pred_region
          %p266 = scmp.lt.s32.totalorder %s18, 1
          %s267 = scalar_select %p266, %s18, 1
          %s268 = smul.addr %s267, 8
          %s269 = scalar_lea.vmem %s0, %s268
        $region36: #{mha_forward.1} parent=31 // pred_fallthru
          _
        // Predicated region
        $region37: #{mha_forward.1} parent=31 // pred_check
          %p270 = pneg %p64
        $region38: #{mha_forward.1} parent=31 // pred_check_branch
          %272 = sbr.rel (%p270) target = $region40
        $region39: #{mha_forward.1} parent=31 // pred_region
          %p273 = scmp.lt.s32.totalorder %s18, 1
          %s274 = scalar_select %p273, %s18, 1
          %s275 = smul.addr %s274, 8
          %s276 = scalar_lea.vmem %s1, %s275
        $region40: #{mha_forward.1} parent=31 // pred_fallthru
          _
        // Predicated region
        $region41: #{mha_forward.1} parent=31 // pred_check
          %p277 = pneg %p90
        $region42: #{mha_forward.1} parent=31 // pred_check_branch
          %279 = sbr.rel (%p277) target = $region44
        $region43: #{mha_forward.1} parent=31 // pred_region
          %p280 = scmp.lt.s32.totalorder %s18, 1
          %s281 = scalar_select %p280, %s18, 1
          %s282 = smul.addr %s281, 8
          %s283 = scalar_lea.vmem %s2, %s282
        $region44: #{mha_forward.1} parent=31 // pred_fallthru
          _
      $region32: #{mha_forward.1} parent=5 // pred_fallthru
        _
      %p284 = scmp.le.s32.totalorder 1, %s18
      %p285 = scmp.lt.s32.totalorder %s18, 3
      %p286 = pnand %p284, %p285
      %p287 = pneg %p286
      // Predicated region
      $region45: #{mha_forward.1} parent=5 // pred_check
        _
      $region46: #{mha_forward.1} parent=5 // pred_check_branch
        %289 = sbr.rel (%p286) target = $region48
      $region47: #{mha_forward.1} parent=5 // pred_region
        %s290 = ssub.s32 %s18, 1
        %p291 = scmp.lt.s32.totalorder %s23, 1
        %s292 = scalar_select %p291, %s23, 1
        %s293 = smul.addr %s292, 8
        %s294 = scalar_lea.vmem %s0, %s293
        %p295 = pneg %p44
        %p296 = pneg %p41
        %p297 = scmp.lt.s32.totalorder %s23, 1
        %s298 = scalar_select %p297, %s23, 1
        %s299 = smul.addr %s298, 8
        %s300 = scalar_lea.vmem %s1, %s299
        %p301 = pneg %p70
        %p302 = pneg %p67
        %p303 = scmp.lt.s32.totalorder %s23, 1
        %s304 = scalar_select %p303, %s23, 1
        %s305 = smul.addr %s304, 8
        %s306 = scalar_lea.vmem %s2, %s305
        %p307 = pneg %p96
        %p308 = pneg %p93
        %p309 = pneg %p117
        %p310 = pneg %p114
        %p311 = pneg %p138
        %p312 = pneg %p135
        %p313 = pneg %p159
        %p314 = pneg %p156
        %p315 = pneg %p180
        %p316 = pneg %p177
        %p317 = pneg %p206
        %p318 = pneg %p203
        %p319 = scmp.lt.s32.totalorder %s23, 1
        %s320 = scalar_select %p319, %s23, 1
        %s321 = smul.addr %s320, 8
        %s322 = scalar_lea.vmem %s7, %s321
        %p323 = pneg %p232
        %p324 = pneg %p229
        %s325 = sand.u32 %s219, 1
        %s326 = scalar_lea.sflag [#allocation3], %s325
        %s327 = sand.u32 %s219, 1
        %s328 = smul.addr %s327, 8
        %s329 = scalar_lea.vmem [#allocation2], %s328
        %p330 = scmp.lt.s32.totalorder %s23, 1
        %s331 = scalar_select %p330, %s23, 1
        %s332 = smul.addr %s331, 8
        %s333 = scalar_lea.vmem %s0, %s332
        %p334 = scmp.lt.s32.totalorder %s23, 1
        %s335 = scalar_select %p334, %s23, 1
        %s336 = smul.addr %s335, 8
        %s337 = scalar_lea.vmem %s1, %s336
        %p338 = scmp.lt.s32.totalorder %s23, 1
        %s339 = scalar_select %p338, %s23, 1
        %s340 = smul.addr %s339, 8
        %s341 = scalar_lea.vmem %s2, %s340
        %p342 = scmp.lt.s32.totalorder %s23, 1
        %s343 = scalar_select %p342, %s23, 1
        %s344 = smul.addr %s343, 8
        %s345 = scalar_lea.vmem %s7, %s344
        %v346 = vld [vmem:[%s333] sm:$0xff]
        %v347 = vld [vmem:[%s337] sm:$0xff]
        %v348 = vld [vmem:[%s341] sm:$0xff]
        %v349 = vld [vmem:[%s3] sm:$0xff]
        %v350 = vld [vmem:[%s3 + $0x8] sm:$0xff]
        %v351 = vld [vmem:[%s3 + $0x10] sm:$0xff]
        %v352 = vld [vmem:[%s3 + $0x18] sm:$0xff]
        %v353 = vld [vmem:[%s3 + $0x20] sm:$0xff]
        %v354 = vld [vmem:[%s3 + $0x28] sm:$0xff]
        %v355 = vld [vmem:[%s3 + $0x30] sm:$0xff]
        %v356 = vld [vmem:[%s3 + $0x38] sm:$0xff]
        %v357 = vld [vmem:[%s3 + $0x40] sm:$0xff]
        %v358 = vld [vmem:[%s3 + $0x48] sm:$0xff]
        %v359 = vld [vmem:[%s3 + $0x50] sm:$0xff]
        %v360 = vld [vmem:[%s3 + $0x58] sm:$0xff]
        %v361 = vld [vmem:[%s4] sm:$0x1]
        %v362 = vld [vmem:[%s4 + $0x1] sm:$0x1]
        %v363 = vld [vmem:[%s4 + $0x2] sm:$0x1]
        %v364 = vlaneseq
        %v365 = vshrl.u32 %v364, 7
        %v366 = vsub.s32 0, %v365
        %v367 = vrot.slane %v361, %v366
        %vm368 = vcmask 261120
        %v370 = vsel %vm368, %v346, 0
        %v373 = vsel %vm368, %v349, 0
        %v376 = vsel %vm368, %v350, 0
        %v379 = vsel %vm368, %v351, 0
        %v382 = vsel %vm368, %v352, 0
        %384 = vmatprep.subr.mxu0 0.0
        %385 = vmatpush1.xpose.msra.mxu0 0.0
        %386 = vmatprep.subr.mxu0 0.0
        %387 = vmatpush1.xpose.msra.mxu0 0.0
        %388 = vmatprep.subr.mxu0 0.0
        %389 = vmatpush1.xpose.msra.mxu0 0.0
        %390 = vmatprep.subr.mxu0 0.0
        %391 = vmatpush1.xpose.msra.mxu0 0.0
        %392 = vmatprep.subr.mxu0 0.0
        %393 = vmatpush1.xpose.msra.mxu0 0.0
        %394 = vmatprep.subr.mxu0 0.0
        %395 = vmatpush1.xpose.msra.mxu0 0.0
        %396 = vmatprep.subr.mxu0 0.0
        %397 = vmatpush1.xpose.msra.mxu0 0.0
        %398 = vmatprep.subr.mxu0 0.0
        %399 = vmatpush1.xpose.msra.mxu0 0.0
        %400 = vmatprep.subr.mxu0 0.0
        %401 = vmatpush1.xpose.msra.mxu0 0.0
        %402 = vmatprep.subr.mxu0 0.0
        %403 = vmatpush1.xpose.msra.mxu0 0.0
        %404 = vmatprep.subr.mxu0 0.0
        %405 = vmatpush1.xpose.msra.mxu0 0.0
        %406 = vmatprep.subr.mxu0 0.0
        %407 = vmatpush1.xpose.msra.mxu0 0.0
        %408 = vmatprep.subr.mxu0 0.0
        %409 = vmatpush1.xpose.msra.mxu0 %v382
        %410 = vmatprep.subr.mxu0 0.0
        %411 = vmatpush1.xpose.msra.mxu0 %v379
        %412 = vmatprep.subr.mxu0 0.0
        %413 = vmatpush1.xpose.msra.mxu0 %v376
        %414 = vmatprep.subr.mxu0 0.0
        %415 = vmatpush1.xpose.msra.mxu0 %v373
        %416 = vmatprep.subr.mxu0 0.0
        %417 = vmatpush2.xpose.msra.mxu0 0.0
        %418 = vmatprep.subr.mxu0 0.0
        %419 = vmatpush2.xpose.msra.mxu0 0.0
        %420 = vmatprep.subr.mxu0 0.0
        %421 = vmatpush2.xpose.msra.mxu0 0.0
        %422 = vmatprep.subr.mxu0 0.0
        %423 = vmatpush2.xpose.msra.mxu0 0.0
        %424 = vmatprep.subr.mxu0 0.0
        %425 = vmatpush2.xpose.msra.mxu0 0.0
        %426 = vmatprep.subr.mxu0 0.0
        %427 = vmatpush2.xpose.msra.mxu0 0.0
        %428 = vmatprep.subr.mxu0 0.0
        %429 = vmatpush2.xpose.msra.mxu0 0.0
        %430 = vmatprep.subr.mxu0 0.0
        %431 = vmatpush2.xpose.msra.mxu0 0.0
        %432 = vmatprep.subr.mxu0 0.0
        %433 = vmatpush2.xpose.msra.mxu0 0.0
        %434 = vmatprep.subr.mxu0 0.0
        %435 = vmatpush2.xpose.msra.mxu0 0.0
        %436 = vmatprep.subr.mxu0 0.0
        %437 = vmatpush2.xpose.msra.mxu0 0.0
        %438 = vmatprep.subr.mxu0 0.0
        %439 = vmatpush2.xpose.msra.mxu0 0.0
        %440 = vmatprep.subr.mxu0 0.0
        %441 = vmatpush2.xpose.msra.mxu0 0.0
        %442 = vmatprep.subr.mxu0 0.0
        %443 = vmatpush2.xpose.msra.mxu0 0.0
        %444 = vmatprep.subr.mxu0 0.0
        %445 = vmatpush2.xpose.msra.mxu0 0.0
        %446 = vmatprep.subr.mxu0 0.0
        %447 = vmatpush2.xpose.msra.mxu0 0.0
        %448 = vmatprep.mubr.f32.mxu0 0.0
        %449 = vmatmul.mubr.f32.gmra.mxu0 %v370
        %v450 = vpop.f32.mrf.mxu0
        %v451 = vadd.f32 %v367, %v450
        %v452 = vpop.f32.mrf.mxu0
        %453 = vdwg.mxu0
        %v454 = vlaneseq
        %v455 = vshrl.u32 %v454, 7
        %v456 = vsub.s32 0, %v455
        %v457 = vrot.slane %v362, %v456
        %v459 = vsel %vm368, %v347, 0
        %v462 = vsel %vm368, %v353, 0
        %v465 = vsel %vm368, %v354, 0
        %v468 = vsel %vm368, %v355, 0
        %v471 = vsel %vm368, %v356, 0
        %473 = vmatprep.subr.mxu0 0.0
        %474 = vmatpush1.xpose.msra.mxu0 0.0
        %475 = vmatprep.subr.mxu0 0.0
        %476 = vmatpush1.xpose.msra.mxu0 0.0
        %477 = vmatprep.subr.mxu0 0.0
        %478 = vmatpush1.xpose.msra.mxu0 0.0
        %479 = vmatprep.subr.mxu0 0.0
        %480 = vmatpush1.xpose.msra.mxu0 0.0
        %481 = vmatprep.subr.mxu0 0.0
        %482 = vmatpush1.xpose.msra.mxu0 0.0
        %483 = vmatprep.subr.mxu0 0.0
        %484 = vmatpush1.xpose.msra.mxu0 0.0
        %485 = vmatprep.subr.mxu0 0.0
        %486 = vmatpush1.xpose.msra.mxu0 0.0
        %487 = vmatprep.subr.mxu0 0.0
        %488 = vmatpush1.xpose.msra.mxu0 0.0
        %489 = vmatprep.subr.mxu0 0.0
        %490 = vmatpush1.xpose.msra.mxu0 0.0
        %491 = vmatprep.subr.mxu0 0.0
        %492 = vmatpush1.xpose.msra.mxu0 0.0
        %493 = vmatprep.subr.mxu0 0.0
        %494 = vmatpush1.xpose.msra.mxu0 0.0
        %495 = vmatprep.subr.mxu0 0.0
        %496 = vmatpush1.xpose.msra.mxu0 0.0
        %497 = vmatprep.subr.mxu0 0.0
        %498 = vmatpush1.xpose.msra.mxu0 %v471
        %499 = vmatprep.subr.mxu0 0.0
        %500 = vmatpush1.xpose.msra.mxu0 %v468
        %501 = vmatprep.subr.mxu0 0.0
        %502 = vmatpush1.xpose.msra.mxu0 %v465
        %503 = vmatprep.subr.mxu0 0.0
        %504 = vmatpush1.xpose.msra.mxu0 %v462
        %505 = vmatprep.subr.mxu0 0.0
        %506 = vmatpush2.xpose.msra.mxu0 0.0
        %507 = vmatprep.subr.mxu0 0.0
        %508 = vmatpush2.xpose.msra.mxu0 0.0
        %509 = vmatprep.subr.mxu0 0.0
        %510 = vmatpush2.xpose.msra.mxu0 0.0
        %511 = vmatprep.subr.mxu0 0.0
        %512 = vmatpush2.xpose.msra.mxu0 0.0
        %513 = vmatprep.subr.mxu0 0.0
        %514 = vmatpush2.xpose.msra.mxu0 0.0
        %515 = vmatprep.subr.mxu0 0.0
        %516 = vmatpush2.xpose.msra.mxu0 0.0
        %517 = vmatprep.subr.mxu0 0.0
        %518 = vmatpush2.xpose.msra.mxu0 0.0
        %519 = vmatprep.subr.mxu0 0.0
        %520 = vmatpush2.xpose.msra.mxu0 0.0
        %521 = vmatprep.subr.mxu0 0.0
        %522 = vmatpush2.xpose.msra.mxu0 0.0
        %523 = vmatprep.subr.mxu0 0.0
        %524 = vmatpush2.xpose.msra.mxu0 0.0
        %525 = vmatprep.subr.mxu0 0.0
        %526 = vmatpush2.xpose.msra.mxu0 0.0
        %527 = vmatprep.subr.mxu0 0.0
        %528 = vmatpush2.xpose.msra.mxu0 0.0
        %529 = vmatprep.subr.mxu0 0.0
        %530 = vmatpush2.xpose.msra.mxu0 0.0
        %531 = vmatprep.subr.mxu0 0.0
        %532 = vmatpush2.xpose.msra.mxu0 0.0
        %533 = vmatprep.subr.mxu0 0.0
        %534 = vmatpush2.xpose.msra.mxu0 0.0
        %535 = vmatprep.subr.mxu0 0.0
        %536 = vmatpush2.xpose.msra.mxu0 0.0
        %537 = vmatprep.mubr.f32.mxu0 0.0
        %538 = vmatmul.mubr.f32.gmra.mxu0 %v459
        %v539 = vpop.f32.mrf.mxu0
        %v540 = vadd.f32 %v457, %v539
        %v541 = vpop.f32.mrf.mxu0
        %542 = vdwg.mxu0
        %v543 = vlaneseq
        %v544 = vshrl.u32 %v543, 7
        %v545 = vsub.s32 0, %v544
        %v546 = vrot.slane %v363, %v545
        %v548 = vsel %vm368, %v348, 0
        %v551 = vsel %vm368, %v357, 0
        %v554 = vsel %vm368, %v358, 0
        %v557 = vsel %vm368, %v359, 0
        %v560 = vsel %vm368, %v360, 0
        %562 = vmatprep.subr.mxu0 0.0
        %563 = vmatpush1.xpose.msra.mxu0 0.0
        %564 = vmatprep.subr.mxu0 0.0
        %565 = vmatpush1.xpose.msra.mxu0 0.0
        %566 = vmatprep.subr.mxu0 0.0
        %567 = vmatpush1.xpose.msra.mxu0 0.0
        %568 = vmatprep.subr.mxu0 0.0
        %569 = vmatpush1.xpose.msra.mxu0 0.0
        %570 = vmatprep.subr.mxu0 0.0
        %571 = vmatpush1.xpose.msra.mxu0 0.0
        %572 = vmatprep.subr.mxu0 0.0
        %573 = vmatpush1.xpose.msra.mxu0 0.0
        %574 = vmatprep.subr.mxu0 0.0
        %575 = vmatpush1.xpose.msra.mxu0 0.0
        %576 = vmatprep.subr.mxu0 0.0
        %577 = vmatpush1.xpose.msra.mxu0 0.0
        %578 = vmatprep.subr.mxu0 0.0
        %579 = vmatpush1.xpose.msra.mxu0 0.0
        %580 = vmatprep.subr.mxu0 0.0
        %581 = vmatpush1.xpose.msra.mxu0 0.0
        %582 = vmatprep.subr.mxu0 0.0
        %583 = vmatpush1.xpose.msra.mxu0 0.0
        %584 = vmatprep.subr.mxu0 0.0
        %585 = vmatpush1.xpose.msra.mxu0 0.0
        %586 = vmatprep.subr.mxu0 0.0
        %587 = vmatpush1.xpose.msra.mxu0 %v560
        %588 = vmatprep.subr.mxu0 0.0
        %589 = vmatpush1.xpose.msra.mxu0 %v557
        %590 = vmatprep.subr.mxu0 0.0
        %591 = vmatpush1.xpose.msra.mxu0 %v554
        %592 = vmatprep.subr.mxu0 0.0
        %593 = vmatpush1.xpose.msra.mxu0 %v551
        %594 = vmatprep.subr.mxu0 0.0
        %595 = vmatpush2.xpose.msra.mxu0 0.0
        %596 = vmatprep.subr.mxu0 0.0
        %597 = vmatpush2.xpose.msra.mxu0 0.0
        %598 = vmatprep.subr.mxu0 0.0
        %599 = vmatpush2.xpose.msra.mxu0 0.0
        %600 = vmatprep.subr.mxu0 0.0
        %601 = vmatpush2.xpose.msra.mxu0 0.0
        %602 = vmatprep.subr.mxu0 0.0
        %603 = vmatpush2.xpose.msra.mxu0 0.0
        %604 = vmatprep.subr.mxu0 0.0
        %605 = vmatpush2.xpose.msra.mxu0 0.0
        %606 = vmatprep.subr.mxu0 0.0
        %607 = vmatpush2.xpose.msra.mxu0 0.0
        %608 = vmatprep.subr.mxu0 0.0
        %609 = vmatpush2.xpose.msra.mxu0 0.0
        %610 = vmatprep.subr.mxu0 0.0
        %611 = vmatpush2.xpose.msra.mxu0 0.0
        %612 = vmatprep.subr.mxu0 0.0
        %613 = vmatpush2.xpose.msra.mxu0 0.0
        %614 = vmatprep.subr.mxu0 0.0
        %615 = vmatpush2.xpose.msra.mxu0 0.0
        %616 = vmatprep.subr.mxu0 0.0
        %617 = vmatpush2.xpose.msra.mxu0 0.0
        %618 = vmatprep.subr.mxu0 0.0
        %619 = vmatpush2.xpose.msra.mxu0 0.0
        %620 = vmatprep.subr.mxu0 0.0
        %621 = vmatpush2.xpose.msra.mxu0 0.0
        %622 = vmatprep.subr.mxu0 0.0
        %623 = vmatpush2.xpose.msra.mxu0 0.0
        %624 = vmatprep.subr.mxu0 0.0
        %625 = vmatpush2.xpose.msra.mxu0 0.0
        %626 = vmatprep.mubr.f32.mxu0 0.0
        %627 = vmatmul.mubr.f32.gmra.mxu0 %v548
        %v628 = vpop.f32.mrf.mxu0
        %v629 = vadd.f32 %v546, %v628
        %v630 = vpop.f32.mrf.mxu0
        %631 = vdwg.mxu0
        %v632 = vmul.f32 %v451, 0.5
        %vm633 = vcmask 31744
        %v635 = vsel %vm633, %v632, 0
        %v638 = vsel %vm633, %v540, 0
        %640 = vmatprep.subr.mxu0 0.0
        %641 = vmatpush1.xpose.msra.mxu0 0.0
        %642 = vmatprep.subr.mxu0 0.0
        %643 = vmatpush1.xpose.msra.mxu0 0.0
        %644 = vmatprep.subr.mxu0 0.0
        %645 = vmatpush1.xpose.msra.mxu0 0.0
        %646 = vmatprep.subr.mxu0 0.0
        %647 = vmatpush1.xpose.msra.mxu0 0.0
        %648 = vmatprep.subr.mxu0 0.0
        %649 = vmatpush1.xpose.msra.mxu0 0.0
        %650 = vmatprep.subr.mxu0 0.0
        %651 = vmatpush1.xpose.msra.mxu0 0.0
        %652 = vmatprep.subr.mxu0 0.0
        %653 = vmatpush1.xpose.msra.mxu0 0.0
        %654 = vmatprep.subr.mxu0 0.0
        %655 = vmatpush1.xpose.msra.mxu0 0.0
        %656 = vmatprep.subr.mxu0 0.0
        %657 = vmatpush1.xpose.msra.mxu0 0.0
        %658 = vmatprep.subr.mxu0 0.0
        %659 = vmatpush1.xpose.msra.mxu0 0.0
        %660 = vmatprep.subr.mxu0 0.0
        %661 = vmatpush1.xpose.msra.mxu0 0.0
        %662 = vmatprep.subr.mxu0 0.0
        %663 = vmatpush1.xpose.msra.mxu0 0.0
        %664 = vmatprep.subr.mxu0 0.0
        %665 = vmatpush1.xpose.msra.mxu0 0.0
        %666 = vmatprep.subr.mxu0 0.0
        %667 = vmatpush1.xpose.msra.mxu0 0.0
        %668 = vmatprep.subr.mxu0 0.0
        %669 = vmatpush1.xpose.msra.mxu0 0.0
        %670 = vmatprep.subr.mxu0 0.0
        %671 = vmatpush1.xpose.msra.mxu0 %v638
        %672 = vmatprep.subr.mxu0 0.0
        %673 = vmatpush2.xpose.msra.mxu0 0.0
        %674 = vmatprep.subr.mxu0 0.0
        %675 = vmatpush2.xpose.msra.mxu0 0.0
        %676 = vmatprep.subr.mxu0 0.0
        %677 = vmatpush2.xpose.msra.mxu0 0.0
        %678 = vmatprep.subr.mxu0 0.0
        %679 = vmatpush2.xpose.msra.mxu0 0.0
        %680 = vmatprep.subr.mxu0 0.0
        %681 = vmatpush2.xpose.msra.mxu0 0.0
        %682 = vmatprep.subr.mxu0 0.0
        %683 = vmatpush2.xpose.msra.mxu0 0.0
        %684 = vmatprep.subr.mxu0 0.0
        %685 = vmatpush2.xpose.msra.mxu0 0.0
        %686 = vmatprep.subr.mxu0 0.0
        %687 = vmatpush2.xpose.msra.mxu0 0.0
        %688 = vmatprep.subr.mxu0 0.0
        %689 = vmatpush2.xpose.msra.mxu0 0.0
        %690 = vmatprep.subr.mxu0 0.0
        %691 = vmatpush2.xpose.msra.mxu0 0.0
        %692 = vmatprep.subr.mxu0 0.0
        %693 = vmatpush2.xpose.msra.mxu0 0.0
        %694 = vmatprep.subr.mxu0 0.0
        %695 = vmatpush2.xpose.msra.mxu0 0.0
        %696 = vmatprep.subr.mxu0 0.0
        %697 = vmatpush2.xpose.msra.mxu0 0.0
        %698 = vmatprep.subr.mxu0 0.0
        %699 = vmatpush2.xpose.msra.mxu0 0.0
        %700 = vmatprep.subr.mxu0 0.0
        %701 = vmatpush2.xpose.msra.mxu0 0.0
        %702 = vmatprep.subr.mxu0 0.0
        %703 = vmatpush2.xpose.msra.mxu0 0.0
        %704 = vmatprep.mubr.f32.mxu0 0.0
        %705 = vmatmul.mubr.f32.gmra.mxu0 %v635
        %v706 = vpop.f32.mrf.mxu0
        %v707 = vadd.f32 0.0, %v706
        %v708 = vpop.f32.mrf.mxu0
        %709 = vdwg.mxu0
        %vm710 = vcmask 64512
        %v711 = vsel %vm710, %v707, -inf
        %712 = vmax.xlane.f32.xlu0 %v711
        %v713 = vpop.xlane.xlu0 %712
        %v714 = vsub.f32 %v707, %v713
        %v715 = vmul.f32 %v714, 1.442695
        %v716 = vpow.pop %v715
        %v717 = vsel %vm710, %v716, 0.0
        %718 = vadd.xlane.f32.xlu0 %v717
        %v719 = vpop.xlane.xlu0 %718
        %v720 = vrcp.pop %v719
        %v721 = vmul.f32 %v716, %v720
        %v723 = vsel %vm710, %v721, 0
        %725 = vmatprep.subr.mxu0 0.0
        %726 = vmatpush1.msra.mxu0 0.0
        %727 = vmatprep.subr.mxu0 0.0
        %728 = vmatpush1.msra.mxu0 0.0
        %729 = vmatprep.subr.mxu0 0.0
        %730 = vmatpush1.msra.mxu0 0.0
        %731 = vmatprep.subr.mxu0 0.0
        %732 = vmatpush1.msra.mxu0 0.0
        %733 = vmatprep.subr.mxu0 0.0
        %734 = vmatpush1.msra.mxu0 0.0
        %735 = vmatprep.subr.mxu0 0.0
        %736 = vmatpush1.msra.mxu0 0.0
        %737 = vmatprep.subr.mxu0 0.0
        %738 = vmatpush1.msra.mxu0 0.0
        %739 = vmatprep.subr.mxu0 0.0
        %740 = vmatpush1.msra.mxu0 0.0
        %741 = vmatprep.subr.mxu0 0.0
        %742 = vmatpush1.msra.mxu0 0.0
        %743 = vmatprep.subr.mxu0 0.0
        %744 = vmatpush1.msra.mxu0 0.0
        %745 = vmatprep.subr.mxu0 0.0
        %746 = vmatpush1.msra.mxu0 0.0
        %747 = vmatprep.subr.mxu0 0.0
        %748 = vmatpush1.msra.mxu0 0.0
        %749 = vmatprep.subr.mxu0 0.0
        %750 = vmatpush1.msra.mxu0 0.0
        %751 = vmatprep.subr.mxu0 0.0
        %752 = vmatpush1.msra.mxu0 0.0
        %753 = vmatprep.subr.mxu0 0.0
        %754 = vmatpush1.msra.mxu0 0.0
        %755 = vmatprep.subr.mxu0 0.0
        %756 = vmatpush1.msra.mxu0 %v629
        %757 = vmatprep.subr.mxu0 0.0
        %758 = vmatpush2.msra.mxu0 0.0
        %759 = vmatprep.subr.mxu0 0.0
        %760 = vmatpush2.msra.mxu0 0.0
        %761 = vmatprep.subr.mxu0 0.0
        %762 = vmatpush2.msra.mxu0 0.0
        %763 = vmatprep.subr.mxu0 0.0
        %764 = vmatpush2.msra.mxu0 0.0
        %765 = vmatprep.subr.mxu0 0.0
        %766 = vmatpush2.msra.mxu0 0.0
        %767 = vmatprep.subr.mxu0 0.0
        %768 = vmatpush2.msra.mxu0 0.0
        %769 = vmatprep.subr.mxu0 0.0
        %770 = vmatpush2.msra.mxu0 0.0
        %771 = vmatprep.subr.mxu0 0.0
        %772 = vmatpush2.msra.mxu0 0.0
        %773 = vmatprep.subr.mxu0 0.0
        %774 = vmatpush2.msra.mxu0 0.0
        %775 = vmatprep.subr.mxu0 0.0
        %776 = vmatpush2.msra.mxu0 0.0
        %777 = vmatprep.subr.mxu0 0.0
        %778 = vmatpush2.msra.mxu0 0.0
        %779 = vmatprep.subr.mxu0 0.0
        %780 = vmatpush2.msra.mxu0 0.0
        %781 = vmatprep.subr.mxu0 0.0
        %782 = vmatpush2.msra.mxu0 0.0
        %783 = vmatprep.subr.mxu0 0.0
        %784 = vmatpush2.msra.mxu0 0.0
        %785 = vmatprep.subr.mxu0 0.0
        %786 = vmatpush2.msra.mxu0 0.0
        %787 = vmatprep.subr.mxu0 0.0
        %788 = vmatpush2.msra.mxu0 0.0
        %789 = vmatprep.mubr.f32.mxu0 0.0
        %790 = vmatmul.mubr.f32.gmra.mxu0 %v723
        %v791 = vpop.f32.mrf.mxu0
        %v792 = vadd.f32 0.0, %v791
        %v793 = vpop.f32.mrf.mxu0
        %794 = vdwg.mxu0
        %795 = vrot.lane.b32.xlu0 %v632, 124
        %v796 = vpop.permute.xlu0 %795
        %797 = vrot.lane.b32.xlu0 %v540, 124
        %v798 = vpop.permute.xlu0 %797
        %v799 = vsel %vm633, %v796, 0
        %v801 = vsel %vm633, %v798, 0
        %803 = vmatprep.subr.mxu0 0.0
        %804 = vmatpush1.xpose.msra.mxu0 0.0
        %805 = vmatprep.subr.mxu0 0.0
        %806 = vmatpush1.xpose.msra.mxu0 0.0
        %807 = vmatprep.subr.mxu0 0.0
        %808 = vmatpush1.xpose.msra.mxu0 0.0
        %809 = vmatprep.subr.mxu0 0.0
        %810 = vmatpush1.xpose.msra.mxu0 0.0
        %811 = vmatprep.subr.mxu0 0.0
        %812 = vmatpush1.xpose.msra.mxu0 0.0
        %813 = vmatprep.subr.mxu0 0.0
        %814 = vmatpush1.xpose.msra.mxu0 0.0
        %815 = vmatprep.subr.mxu0 0.0
        %816 = vmatpush1.xpose.msra.mxu0 0.0
        %817 = vmatprep.subr.mxu0 0.0
        %818 = vmatpush1.xpose.msra.mxu0 0.0
        %819 = vmatprep.subr.mxu0 0.0
        %820 = vmatpush1.xpose.msra.mxu0 0.0
        %821 = vmatprep.subr.mxu0 0.0
        %822 = vmatpush1.xpose.msra.mxu0 0.0
        %823 = vmatprep.subr.mxu0 0.0
        %824 = vmatpush1.xpose.msra.mxu0 0.0
        %825 = vmatprep.subr.mxu0 0.0
        %826 = vmatpush1.xpose.msra.mxu0 0.0
        %827 = vmatprep.subr.mxu0 0.0
        %828 = vmatpush1.xpose.msra.mxu0 0.0
        %829 = vmatprep.subr.mxu0 0.0
        %830 = vmatpush1.xpose.msra.mxu0 0.0
        %831 = vmatprep.subr.mxu0 0.0
        %832 = vmatpush1.xpose.msra.mxu0 0.0
        %833 = vmatprep.subr.mxu0 0.0
        %834 = vmatpush1.xpose.msra.mxu0 %v801
        %835 = vmatprep.subr.mxu0 0.0
        %836 = vmatpush2.xpose.msra.mxu0 0.0
        %837 = vmatprep.subr.mxu0 0.0
        %838 = vmatpush2.xpose.msra.mxu0 0.0
        %839 = vmatprep.subr.mxu0 0.0
        %840 = vmatpush2.xpose.msra.mxu0 0.0
        %841 = vmatprep.subr.mxu0 0.0
        %842 = vmatpush2.xpose.msra.mxu0 0.0
        %843 = vmatprep.subr.mxu0 0.0
        %844 = vmatpush2.xpose.msra.mxu0 0.0
        %845 = vmatprep.subr.mxu0 0.0
        %846 = vmatpush2.xpose.msra.mxu0 0.0
        %847 = vmatprep.subr.mxu0 0.0
        %848 = vmatpush2.xpose.msra.mxu0 0.0
        %849 = vmatprep.subr.mxu0 0.0
        %850 = vmatpush2.xpose.msra.mxu0 0.0
        %851 = vmatprep.subr.mxu0 0.0
        %852 = vmatpush2.xpose.msra.mxu0 0.0
        %853 = vmatprep.subr.mxu0 0.0
        %854 = vmatpush2.xpose.msra.mxu0 0.0
        %855 = vmatprep.subr.mxu0 0.0
        %856 = vmatpush2.xpose.msra.mxu0 0.0
        %857 = vmatprep.subr.mxu0 0.0
        %858 = vmatpush2.xpose.msra.mxu0 0.0
        %859 = vmatprep.subr.mxu0 0.0
        %860 = vmatpush2.xpose.msra.mxu0 0.0
        %861 = vmatprep.subr.mxu0 0.0
        %862 = vmatpush2.xpose.msra.mxu0 0.0
        %863 = vmatprep.subr.mxu0 0.0
        %864 = vmatpush2.xpose.msra.mxu0 0.0
        %865 = vmatprep.subr.mxu0 0.0
        %866 = vmatpush2.xpose.msra.mxu0 0.0
        %867 = vmatprep.mubr.f32.mxu0 0.0
        %868 = vmatmul.mubr.f32.gmra.mxu0 %v799
        %v869 = vpop.f32.mrf.mxu0
        %v870 = vadd.f32 0.0, %v869
        %v871 = vpop.f32.mrf.mxu0
        %872 = vdwg.mxu0
        %v873 = vsel %vm710, %v870, -inf
        %874 = vmax.xlane.f32.xlu0 %v873
        %v875 = vpop.xlane.xlu0 %874
        %v876 = vsub.f32 %v870, %v875
        %v877 = vmul.f32 %v876, 1.442695
        %v878 = vpow.pop %v877
        %v879 = vsel %vm710, %v878, 0.0
        %880 = vadd.xlane.f32.xlu0 %v879
        %v881 = vpop.xlane.xlu0 %880
        %v882 = vrcp.pop %v881
        %v883 = vmul.f32 %v878, %v882
        %v884 = vadd.f32 %v721, %v883
        %886 = vrot.lane.b32.xlu0 %v629, 124
        %v887 = vpop.permute.xlu0 %886
        %v890 = vsel %vm710, %v883, 0
        %892 = vmatprep.subr.mxu0 0.0
        %893 = vmatpush1.msra.mxu0 0.0
        %894 = vmatprep.subr.mxu0 0.0
        %895 = vmatpush1.msra.mxu0 0.0
        %896 = vmatprep.subr.mxu0 0.0
        %897 = vmatpush1.msra.mxu0 0.0
        %898 = vmatprep.subr.mxu0 0.0
        %899 = vmatpush1.msra.mxu0 0.0
        %900 = vmatprep.subr.mxu0 0.0
        %901 = vmatpush1.msra.mxu0 0.0
        %902 = vmatprep.subr.mxu0 0.0
        %903 = vmatpush1.msra.mxu0 0.0
        %904 = vmatprep.subr.mxu0 0.0
        %905 = vmatpush1.msra.mxu0 0.0
        %906 = vmatprep.subr.mxu0 0.0
        %907 = vmatpush1.msra.mxu0 0.0
        %908 = vmatprep.subr.mxu0 0.0
        %909 = vmatpush1.msra.mxu0 0.0
        %910 = vmatprep.subr.mxu0 0.0
        %911 = vmatpush1.msra.mxu0 0.0
        %912 = vmatprep.subr.mxu0 0.0
        %913 = vmatpush1.msra.mxu0 0.0
        %914 = vmatprep.subr.mxu0 0.0
        %915 = vmatpush1.msra.mxu0 0.0
        %916 = vmatprep.subr.mxu0 0.0
        %917 = vmatpush1.msra.mxu0 0.0
        %918 = vmatprep.subr.mxu0 0.0
        %919 = vmatpush1.msra.mxu0 0.0
        %920 = vmatprep.subr.mxu0 0.0
        %921 = vmatpush1.msra.mxu0 0.0
        %922 = vmatprep.subr.mxu0 0.0
        %923 = vmatpush1.msra.mxu0 %v887
        %924 = vmatprep.subr.mxu0 0.0
        %925 = vmatpush2.msra.mxu0 0.0
        %926 = vmatprep.subr.mxu0 0.0
        %927 = vmatpush2.msra.mxu0 0.0
        %928 = vmatprep.subr.mxu0 0.0
        %929 = vmatpush2.msra.mxu0 0.0
        %930 = vmatprep.subr.mxu0 0.0
        %931 = vmatpush2.msra.mxu0 0.0
        %932 = vmatprep.subr.mxu0 0.0
        %933 = vmatpush2.msra.mxu0 0.0
        %934 = vmatprep.subr.mxu0 0.0
        %935 = vmatpush2.msra.mxu0 0.0
        %936 = vmatprep.subr.mxu0 0.0
        %937 = vmatpush2.msra.mxu0 0.0
        %938 = vmatprep.subr.mxu0 0.0
        %939 = vmatpush2.msra.mxu0 0.0
        %940 = vmatprep.subr.mxu0 0.0
        %941 = vmatpush2.msra.mxu0 0.0
        %942 = vmatprep.subr.mxu0 0.0
        %943 = vmatpush2.msra.mxu0 0.0
        %944 = vmatprep.subr.mxu0 0.0
        %945 = vmatpush2.msra.mxu0 0.0
        %946 = vmatprep.subr.mxu0 0.0
        %947 = vmatpush2.msra.mxu0 0.0
        %948 = vmatprep.subr.mxu0 0.0
        %949 = vmatpush2.msra.mxu0 0.0
        %950 = vmatprep.subr.mxu0 0.0
        %951 = vmatpush2.msra.mxu0 0.0
        %952 = vmatprep.subr.mxu0 0.0
        %953 = vmatpush2.msra.mxu0 0.0
        %954 = vmatprep.subr.mxu0 0.0
        %955 = vmatpush2.msra.mxu0 0.0
        %956 = vmatprep.mubr.f32.mxu0 0.0
        %957 = vmatmul.mubr.f32.gmra.mxu0 %v890
        %v958 = vpop.f32.mrf.mxu0
        %v959 = vadd.f32 0.0, %v958
        %v960 = vpop.f32.mrf.mxu0
        %961 = vdwg.mxu0
        %962 = vrot.lane.b32.xlu0 %v632, 120
        %v963 = vpop.permute.xlu0 %962
        %964 = vrot.lane.b32.xlu0 %v540, 120
        %v965 = vpop.permute.xlu0 %964
        %v966 = vsel %vm633, %v963, 0
        %v968 = vsel %vm633, %v965, 0
        %970 = vmatprep.subr.mxu0 0.0
        %971 = vmatpush1.xpose.msra.mxu0 0.0
        %972 = vmatprep.subr.mxu0 0.0
        %973 = vmatpush1.xpose.msra.mxu0 0.0
        %974 = vmatprep.subr.mxu0 0.0
        %975 = vmatpush1.xpose.msra.mxu0 0.0
        %976 = vmatprep.subr.mxu0 0.0
        %977 = vmatpush1.xpose.msra.mxu0 0.0
        %978 = vmatprep.subr.mxu0 0.0
        %979 = vmatpush1.xpose.msra.mxu0 0.0
        %980 = vmatprep.subr.mxu0 0.0
        %981 = vmatpush1.xpose.msra.mxu0 0.0
        %982 = vmatprep.subr.mxu0 0.0
        %983 = vmatpush1.xpose.msra.mxu0 0.0
        %984 = vmatprep.subr.mxu0 0.0
        %985 = vmatpush1.xpose.msra.mxu0 0.0
        %986 = vmatprep.subr.mxu0 0.0
        %987 = vmatpush1.xpose.msra.mxu0 0.0
        %988 = vmatprep.subr.mxu0 0.0
        %989 = vmatpush1.xpose.msra.mxu0 0.0
        %990 = vmatprep.subr.mxu0 0.0
        %991 = vmatpush1.xpose.msra.mxu0 0.0
        %992 = vmatprep.subr.mxu0 0.0
        %993 = vmatpush1.xpose.msra.mxu0 0.0
        %994 = vmatprep.subr.mxu0 0.0
        %995 = vmatpush1.xpose.msra.mxu0 0.0
        %996 = vmatprep.subr.mxu0 0.0
        %997 = vmatpush1.xpose.msra.mxu0 0.0
        %998 = vmatprep.subr.mxu0 0.0
        %999 = vmatpush1.xpose.msra.mxu0 0.0
        %1000 = vmatprep.subr.mxu0 0.0
        %1001 = vmatpush1.xpose.msra.mxu0 %v968
        %1002 = vmatprep.subr.mxu0 0.0
        %1003 = vmatpush2.xpose.msra.mxu0 0.0
        %1004 = vmatprep.subr.mxu0 0.0
        %1005 = vmatpush2.xpose.msra.mxu0 0.0
        %1006 = vmatprep.subr.mxu0 0.0
        %1007 = vmatpush2.xpose.msra.mxu0 0.0
        %1008 = vmatprep.subr.mxu0 0.0
        %1009 = vmatpush2.xpose.msra.mxu0 0.0
        %1010 = vmatprep.subr.mxu0 0.0
        %1011 = vmatpush2.xpose.msra.mxu0 0.0
        %1012 = vmatprep.subr.mxu0 0.0
        %1013 = vmatpush2.xpose.msra.mxu0 0.0
        %1014 = vmatprep.subr.mxu0 0.0
        %1015 = vmatpush2.xpose.msra.mxu0 0.0
        %1016 = vmatprep.subr.mxu0 0.0
        %1017 = vmatpush2.xpose.msra.mxu0 0.0
        %1018 = vmatprep.subr.mxu0 0.0
        %1019 = vmatpush2.xpose.msra.mxu0 0.0
        %1020 = vmatprep.subr.mxu0 0.0
        %1021 = vmatpush2.xpose.msra.mxu0 0.0
        %1022 = vmatprep.subr.mxu0 0.0
        %1023 = vmatpush2.xpose.msra.mxu0 0.0
        %1024 = vmatprep.subr.mxu0 0.0
        %1025 = vmatpush2.xpose.msra.mxu0 0.0
        %1026 = vmatprep.subr.mxu0 0.0
        %1027 = vmatpush2.xpose.msra.mxu0 0.0
        %1028 = vmatprep.subr.mxu0 0.0
        %1029 = vmatpush2.xpose.msra.mxu0 0.0
        %1030 = vmatprep.subr.mxu0 0.0
        %1031 = vmatpush2.xpose.msra.mxu0 0.0
        %1032 = vmatprep.subr.mxu0 0.0
        %1033 = vmatpush2.xpose.msra.mxu0 0.0
        %1034 = vmatprep.mubr.f32.mxu0 0.0
        %1035 = vmatmul.mubr.f32.gmra.mxu0 %v966
        %v1036 = vpop.f32.mrf.mxu0
        %v1037 = vadd.f32 0.0, %v1036
        %v1038 = vpop.f32.mrf.mxu0
        %1039 = vdwg.mxu0
        %v1040 = vsel %vm710, %v1037, -inf
        %1041 = vmax.xlane.f32.xlu0 %v1040
        %v1042 = vpop.xlane.xlu0 %1041
        %v1043 = vsub.f32 %v1037, %v1042
        %v1044 = vmul.f32 %v1043, 1.442695
        %v1045 = vpow.pop %v1044
        %v1046 = vsel %vm710, %v1045, 0.0
        %1047 = vadd.xlane.f32.xlu0 %v1046
        %v1048 = vpop.xlane.xlu0 %1047
        %v1049 = vrcp.pop %v1048
        %v1050 = vmul.f32 %v1045, %v1049
        %v1051 = vadd.f32 %v884, %v1050
        %1052 = vrot.lane.b32.xlu0 %v629, 120
        %v1053 = vpop.permute.xlu0 %1052
        %v1056 = vsel %vm710, %v1050, 0
        %1058 = vmatprep.subr.mxu0 0.0
        %1059 = vmatpush1.msra.mxu0 0.0
        %1060 = vmatprep.subr.mxu0 0.0
        %1061 = vmatpush1.msra.mxu0 0.0
        %1062 = vmatprep.subr.mxu0 0.0
        %1063 = vmatpush1.msra.mxu0 0.0
        %1064 = vmatprep.subr.mxu0 0.0
        %1065 = vmatpush1.msra.mxu0 0.0
        %1066 = vmatprep.subr.mxu0 0.0
        %1067 = vmatpush1.msra.mxu0 0.0
        %1068 = vmatprep.subr.mxu0 0.0
        %1069 = vmatpush1.msra.mxu0 0.0
        %1070 = vmatprep.subr.mxu0 0.0
        %1071 = vmatpush1.msra.mxu0 0.0
        %1072 = vmatprep.subr.mxu0 0.0
        %1073 = vmatpush1.msra.mxu0 0.0
        %1074 = vmatprep.subr.mxu0 0.0
        %1075 = vmatpush1.msra.mxu0 0.0
        %1076 = vmatprep.subr.mxu0 0.0
        %1077 = vmatpush1.msra.mxu0 0.0
        %1078 = vmatprep.subr.mxu0 0.0
        %1079 = vmatpush1.msra.mxu0 0.0
        %1080 = vmatprep.subr.mxu0 0.0
        %1081 = vmatpush1.msra.mxu0 0.0
        %1082 = vmatprep.subr.mxu0 0.0
        %1083 = vmatpush1.msra.mxu0 0.0
        %1084 = vmatprep.subr.mxu0 0.0
        %1085 = vmatpush1.msra.mxu0 0.0
        %1086 = vmatprep.subr.mxu0 0.0
        %1087 = vmatpush1.msra.mxu0 0.0
        %1088 = vmatprep.subr.mxu0 0.0
        %1089 = vmatpush1.msra.mxu0 %v1053
        %1090 = vmatprep.subr.mxu0 0.0
        %1091 = vmatpush2.msra.mxu0 0.0
        %1092 = vmatprep.subr.mxu0 0.0
        %1093 = vmatpush2.msra.mxu0 0.0
        %1094 = vmatprep.subr.mxu0 0.0
        %1095 = vmatpush2.msra.mxu0 0.0
        %1096 = vmatprep.subr.mxu0 0.0
        %1097 = vmatpush2.msra.mxu0 0.0
        %1098 = vmatprep.subr.mxu0 0.0
        %1099 = vmatpush2.msra.mxu0 0.0
        %1100 = vmatprep.subr.mxu0 0.0
        %1101 = vmatpush2.msra.mxu0 0.0
        %1102 = vmatprep.subr.mxu0 0.0
        %1103 = vmatpush2.msra.mxu0 0.0
        %1104 = vmatprep.subr.mxu0 0.0
        %1105 = vmatpush2.msra.mxu0 0.0
        %1106 = vmatprep.subr.mxu0 0.0
        %1107 = vmatpush2.msra.mxu0 0.0
        %1108 = vmatprep.subr.mxu0 0.0
        %1109 = vmatpush2.msra.mxu0 0.0
        %1110 = vmatprep.subr.mxu0 0.0
        %1111 = vmatpush2.msra.mxu0 0.0
        %1112 = vmatprep.subr.mxu0 0.0
        %1113 = vmatpush2.msra.mxu0 0.0
        %1114 = vmatprep.subr.mxu0 0.0
        %1115 = vmatpush2.msra.mxu0 0.0
        %1116 = vmatprep.subr.mxu0 0.0
        %1117 = vmatpush2.msra.mxu0 0.0
        %1118 = vmatprep.subr.mxu0 0.0
        %1119 = vmatpush2.msra.mxu0 0.0
        %1120 = vmatprep.subr.mxu0 0.0
        %1121 = vmatpush2.msra.mxu0 0.0
        %1122 = vmatprep.mubr.f32.mxu0 0.0
        %1123 = vmatmul.mubr.f32.gmra.mxu0 %v1056
        %v1124 = vpop.f32.mrf.mxu0
        %v1125 = vadd.f32 0.0, %v1124
        %v1126 = vpop.f32.mrf.mxu0
        %1127 = vdwg.mxu0
        %1128 = vrot.lane.b32.xlu0 %v632, 116
        %v1129 = vpop.permute.xlu0 %1128
        %1130 = vrot.lane.b32.xlu0 %v540, 116
        %v1131 = vpop.permute.xlu0 %1130
        %v1132 = vsel %vm633, %v1129, 0
        %v1134 = vsel %vm633, %v1131, 0
        %1136 = vmatprep.subr.mxu0 0.0
        %1137 = vmatpush1.xpose.msra.mxu0 0.0
        %1138 = vmatprep.subr.mxu0 0.0
        %1139 = vmatpush1.xpose.msra.mxu0 0.0
        %1140 = vmatprep.subr.mxu0 0.0
        %1141 = vmatpush1.xpose.msra.mxu0 0.0
        %1142 = vmatprep.subr.mxu0 0.0
        %1143 = vmatpush1.xpose.msra.mxu0 0.0
        %1144 = vmatprep.subr.mxu0 0.0
        %1145 = vmatpush1.xpose.msra.mxu0 0.0
        %1146 = vmatprep.subr.mxu0 0.0
        %1147 = vmatpush1.xpose.msra.mxu0 0.0
        %1148 = vmatprep.subr.mxu0 0.0
        %1149 = vmatpush1.xpose.msra.mxu0 0.0
        %1150 = vmatprep.subr.mxu0 0.0
        %1151 = vmatpush1.xpose.msra.mxu0 0.0
        %1152 = vmatprep.subr.mxu0 0.0
        %1153 = vmatpush1.xpose.msra.mxu0 0.0
        %1154 = vmatprep.subr.mxu0 0.0
        %1155 = vmatpush1.xpose.msra.mxu0 0.0
        %1156 = vmatprep.subr.mxu0 0.0
        %1157 = vmatpush1.xpose.msra.mxu0 0.0
        %1158 = vmatprep.subr.mxu0 0.0
        %1159 = vmatpush1.xpose.msra.mxu0 0.0
        %1160 = vmatprep.subr.mxu0 0.0
        %1161 = vmatpush1.xpose.msra.mxu0 0.0
        %1162 = vmatprep.subr.mxu0 0.0
        %1163 = vmatpush1.xpose.msra.mxu0 0.0
        %1164 = vmatprep.subr.mxu0 0.0
        %1165 = vmatpush1.xpose.msra.mxu0 0.0
        %1166 = vmatprep.subr.mxu0 0.0
        %1167 = vmatpush1.xpose.msra.mxu0 %v1134
        %1168 = vmatprep.subr.mxu0 0.0
        %1169 = vmatpush2.xpose.msra.mxu0 0.0
        %1170 = vmatprep.subr.mxu0 0.0
        %1171 = vmatpush2.xpose.msra.mxu0 0.0
        %1172 = vmatprep.subr.mxu0 0.0
        %1173 = vmatpush2.xpose.msra.mxu0 0.0
        %1174 = vmatprep.subr.mxu0 0.0
        %1175 = vmatpush2.xpose.msra.mxu0 0.0
        %1176 = vmatprep.subr.mxu0 0.0
        %1177 = vmatpush2.xpose.msra.mxu0 0.0
        %1178 = vmatprep.subr.mxu0 0.0
        %1179 = vmatpush2.xpose.msra.mxu0 0.0
        %1180 = vmatprep.subr.mxu0 0.0
        %1181 = vmatpush2.xpose.msra.mxu0 0.0
        %1182 = vmatprep.subr.mxu0 0.0
        %1183 = vmatpush2.xpose.msra.mxu0 0.0
        %1184 = vmatprep.subr.mxu0 0.0
        %1185 = vmatpush2.xpose.msra.mxu0 0.0
        %1186 = vmatprep.subr.mxu0 0.0
        %1187 = vmatpush2.xpose.msra.mxu0 0.0
        %1188 = vmatprep.subr.mxu0 0.0
        %1189 = vmatpush2.xpose.msra.mxu0 0.0
        %1190 = vmatprep.subr.mxu0 0.0
        %1191 = vmatpush2.xpose.msra.mxu0 0.0
        %1192 = vmatprep.subr.mxu0 0.0
        %1193 = vmatpush2.xpose.msra.mxu0 0.0
        %1194 = vmatprep.subr.mxu0 0.0
        %1195 = vmatpush2.xpose.msra.mxu0 0.0
        %1196 = vmatprep.subr.mxu0 0.0
        %1197 = vmatpush2.xpose.msra.mxu0 0.0
        %1198 = vmatprep.subr.mxu0 0.0
        %1199 = vmatpush2.xpose.msra.mxu0 0.0
        %1200 = vmatprep.mubr.f32.mxu0 0.0
        %1201 = vmatmul.mubr.f32.gmra.mxu0 %v1132
        %v1202 = vpop.f32.mrf.mxu0
        %v1203 = vadd.f32 0.0, %v1202
        %v1204 = vpop.f32.mrf.mxu0
        %1205 = vdwg.mxu0
        %v1206 = vsel %vm710, %v1203, -inf
        %1207 = vmax.xlane.f32.xlu0 %v1206
        %v1208 = vpop.xlane.xlu0 %1207
        %v1209 = vsub.f32 %v1203, %v1208
        %v1210 = vmul.f32 %v1209, 1.442695
        %v1211 = vpow.pop %v1210
        %v1212 = vsel %vm710, %v1211, 0.0
        %1213 = vadd.xlane.f32.xlu0 %v1212
        %v1214 = vpop.xlane.xlu0 %1213
        %v1215 = vrcp.pop %v1214
        %v1216 = vmul.f32 %v1211, %v1215
        %v1217 = vadd.f32 %v1051, %v1216
        %1218 = vrot.lane.b32.xlu0 %v629, 116
        %v1219 = vpop.permute.xlu0 %1218
        %v1222 = vsel %vm710, %v1216, 0
        %1224 = vmatprep.subr.mxu0 0.0
        %1225 = vmatpush1.msra.mxu0 0.0
        %1226 = vmatprep.subr.mxu0 0.0
        %1227 = vmatpush1.msra.mxu0 0.0
        %1228 = vmatprep.subr.mxu0 0.0
        %1229 = vmatpush1.msra.mxu0 0.0
        %1230 = vmatprep.subr.mxu0 0.0
        %1231 = vmatpush1.msra.mxu0 0.0
        %1232 = vmatprep.subr.mxu0 0.0
        %1233 = vmatpush1.msra.mxu0 0.0
        %1234 = vmatprep.subr.mxu0 0.0
        %1235 = vmatpush1.msra.mxu0 0.0
        %1236 = vmatprep.subr.mxu0 0.0
        %1237 = vmatpush1.msra.mxu0 0.0
        %1238 = vmatprep.subr.mxu0 0.0
        %1239 = vmatpush1.msra.mxu0 0.0
        %1240 = vmatprep.subr.mxu0 0.0
        %1241 = vmatpush1.msra.mxu0 0.0
        %1242 = vmatprep.subr.mxu0 0.0
        %1243 = vmatpush1.msra.mxu0 0.0
        %1244 = vmatprep.subr.mxu0 0.0
        %1245 = vmatpush1.msra.mxu0 0.0
        %1246 = vmatprep.subr.mxu0 0.0
        %1247 = vmatpush1.msra.mxu0 0.0
        %1248 = vmatprep.subr.mxu0 0.0
        %1249 = vmatpush1.msra.mxu0 0.0
        %1250 = vmatprep.subr.mxu0 0.0
        %1251 = vmatpush1.msra.mxu0 0.0
        %1252 = vmatprep.subr.mxu0 0.0
        %1253 = vmatpush1.msra.mxu0 0.0
        %1254 = vmatprep.subr.mxu0 0.0
        %1255 = vmatpush1.msra.mxu0 %v1219
        %1256 = vmatprep.subr.mxu0 0.0
        %1257 = vmatpush2.msra.mxu0 0.0
        %1258 = vmatprep.subr.mxu0 0.0
        %1259 = vmatpush2.msra.mxu0 0.0
        %1260 = vmatprep.subr.mxu0 0.0
        %1261 = vmatpush2.msra.mxu0 0.0
        %1262 = vmatprep.subr.mxu0 0.0
        %1263 = vmatpush2.msra.mxu0 0.0
        %1264 = vmatprep.subr.mxu0 0.0
        %1265 = vmatpush2.msra.mxu0 0.0
        %1266 = vmatprep.subr.mxu0 0.0
        %1267 = vmatpush2.msra.mxu0 0.0
        %1268 = vmatprep.subr.mxu0 0.0
        %1269 = vmatpush2.msra.mxu0 0.0
        %1270 = vmatprep.subr.mxu0 0.0
        %1271 = vmatpush2.msra.mxu0 0.0
        %1272 = vmatprep.subr.mxu0 0.0
        %1273 = vmatpush2.msra.mxu0 0.0
        %1274 = vmatprep.subr.mxu0 0.0
        %1275 = vmatpush2.msra.mxu0 0.0
        %1276 = vmatprep.subr.mxu0 0.0
        %1277 = vmatpush2.msra.mxu0 0.0
        %1278 = vmatprep.subr.mxu0 0.0
        %1279 = vmatpush2.msra.mxu0 0.0
        %1280 = vmatprep.subr.mxu0 0.0
        %1281 = vmatpush2.msra.mxu0 0.0
        %1282 = vmatprep.subr.mxu0 0.0
        %1283 = vmatpush2.msra.mxu0 0.0
        %1284 = vmatprep.subr.mxu0 0.0
        %1285 = vmatpush2.msra.mxu0 0.0
        %1286 = vmatprep.subr.mxu0 0.0
        %1287 = vmatpush2.msra.mxu0 0.0
        %1288 = vmatprep.mubr.f32.mxu0 0.0
        %1289 = vmatmul.mubr.f32.gmra.mxu0 %v1222
        %v1290 = vpop.f32.mrf.mxu0
        %v1291 = vadd.f32 0.0, %v1290
        %v1292 = vpop.f32.mrf.mxu0
        %1293 = vdwg.mxu0
        %1294 = vrot.lane.b32.xlu0 %v632, 112
        %v1295 = vpop.permute.xlu0 %1294
        %1296 = vrot.lane.b32.xlu0 %v540, 112
        %v1297 = vpop.permute.xlu0 %1296
        %v1298 = vsel %vm633, %v1295, 0
        %v1300 = vsel %vm633, %v1297, 0
        %1302 = vmatprep.subr.mxu0 0.0
        %1303 = vmatpush1.xpose.msra.mxu0 0.0
        %1304 = vmatprep.subr.mxu0 0.0
        %1305 = vmatpush1.xpose.msra.mxu0 0.0
        %1306 = vmatprep.subr.mxu0 0.0
        %1307 = vmatpush1.xpose.msra.mxu0 0.0
        %1308 = vmatprep.subr.mxu0 0.0
        %1309 = vmatpush1.xpose.msra.mxu0 0.0
        %1310 = vmatprep.subr.mxu0 0.0
        %1311 = vmatpush1.xpose.msra.mxu0 0.0
        %1312 = vmatprep.subr.mxu0 0.0
        %1313 = vmatpush1.xpose.msra.mxu0 0.0
        %1314 = vmatprep.subr.mxu0 0.0
        %1315 = vmatpush1.xpose.msra.mxu0 0.0
        %1316 = vmatprep.subr.mxu0 0.0
        %1317 = vmatpush1.xpose.msra.mxu0 0.0
        %1318 = vmatprep.subr.mxu0 0.0
        %1319 = vmatpush1.xpose.msra.mxu0 0.0
        %1320 = vmatprep.subr.mxu0 0.0
        %1321 = vmatpush1.xpose.msra.mxu0 0.0
        %1322 = vmatprep.subr.mxu0 0.0
        %1323 = vmatpush1.xpose.msra.mxu0 0.0
        %1324 = vmatprep.subr.mxu0 0.0
        %1325 = vmatpush1.xpose.msra.mxu0 0.0
        %1326 = vmatprep.subr.mxu0 0.0
        %1327 = vmatpush1.xpose.msra.mxu0 0.0
        %1328 = vmatprep.subr.mxu0 0.0
        %1329 = vmatpush1.xpose.msra.mxu0 0.0
        %1330 = vmatprep.subr.mxu0 0.0
        %1331 = vmatpush1.xpose.msra.mxu0 0.0
        %1332 = vmatprep.subr.mxu0 0.0
        %1333 = vmatpush1.xpose.msra.mxu0 %v1300
        %1334 = vmatprep.subr.mxu0 0.0
        %1335 = vmatpush2.xpose.msra.mxu0 0.0
        %1336 = vmatprep.subr.mxu0 0.0
        %1337 = vmatpush2.xpose.msra.mxu0 0.0
        %1338 = vmatprep.subr.mxu0 0.0
        %1339 = vmatpush2.xpose.msra.mxu0 0.0
        %1340 = vmatprep.subr.mxu0 0.0
        %1341 = vmatpush2.xpose.msra.mxu0 0.0
        %1342 = vmatprep.subr.mxu0 0.0
        %1343 = vmatpush2.xpose.msra.mxu0 0.0
        %1344 = vmatprep.subr.mxu0 0.0
        %1345 = vmatpush2.xpose.msra.mxu0 0.0
        %1346 = vmatprep.subr.mxu0 0.0
        %1347 = vmatpush2.xpose.msra.mxu0 0.0
        %1348 = vmatprep.subr.mxu0 0.0
        %1349 = vmatpush2.xpose.msra.mxu0 0.0
        %1350 = vmatprep.subr.mxu0 0.0
        %1351 = vmatpush2.xpose.msra.mxu0 0.0
        %1352 = vmatprep.subr.mxu0 0.0
        %1353 = vmatpush2.xpose.msra.mxu0 0.0
        %1354 = vmatprep.subr.mxu0 0.0
        %1355 = vmatpush2.xpose.msra.mxu0 0.0
        %1356 = vmatprep.subr.mxu0 0.0
        %1357 = vmatpush2.xpose.msra.mxu0 0.0
        %1358 = vmatprep.subr.mxu0 0.0
        %1359 = vmatpush2.xpose.msra.mxu0 0.0
        %1360 = vmatprep.subr.mxu0 0.0
        %1361 = vmatpush2.xpose.msra.mxu0 0.0
        %1362 = vmatprep.subr.mxu0 0.0
        %1363 = vmatpush2.xpose.msra.mxu0 0.0
        %1364 = vmatprep.subr.mxu0 0.0
        %1365 = vmatpush2.xpose.msra.mxu0 0.0
        %1366 = vmatprep.mubr.f32.mxu0 0.0
        %1367 = vmatmul.mubr.f32.gmra.mxu0 %v1298
        %v1368 = vpop.f32.mrf.mxu0
        %v1369 = vadd.f32 0.0, %v1368
        %v1370 = vpop.f32.mrf.mxu0
        %1371 = vdwg.mxu0
        %v1372 = vsel %vm710, %v1369, -inf
        %1373 = vmax.xlane.f32.xlu0 %v1372
        %v1374 = vpop.xlane.xlu0 %1373
        %v1375 = vsub.f32 %v1369, %v1374
        %v1376 = vmul.f32 %v1375, 1.442695
        %v1377 = vpow.pop %v1376
        %v1378 = vsel %vm710, %v1377, 0.0
        %1379 = vadd.xlane.f32.xlu0 %v1378
        %v1380 = vpop.xlane.xlu0 %1379
        %v1381 = vrcp.pop %v1380
        %v1382 = vmul.f32 %v1377, %v1381
        %v1383 = vadd.f32 %v1217, %v1382
        %1384 = vrot.lane.b32.xlu0 %v629, 112
        %v1385 = vpop.permute.xlu0 %1384
        %v1388 = vsel %vm710, %v1382, 0
        %1390 = vmatprep.subr.mxu0 0.0
        %1391 = vmatpush1.msra.mxu0 0.0
        %1392 = vmatprep.subr.mxu0 0.0
        %1393 = vmatpush1.msra.mxu0 0.0
        %1394 = vmatprep.subr.mxu0 0.0
        %1395 = vmatpush1.msra.mxu0 0.0
        %1396 = vmatprep.subr.mxu0 0.0
        %1397 = vmatpush1.msra.mxu0 0.0
        %1398 = vmatprep.subr.mxu0 0.0
        %1399 = vmatpush1.msra.mxu0 0.0
        %1400 = vmatprep.subr.mxu0 0.0
        %1401 = vmatpush1.msra.mxu0 0.0
        %1402 = vmatprep.subr.mxu0 0.0
        %1403 = vmatpush1.msra.mxu0 0.0
        %1404 = vmatprep.subr.mxu0 0.0
        %1405 = vmatpush1.msra.mxu0 0.0
        %1406 = vmatprep.subr.mxu0 0.0
        %1407 = vmatpush1.msra.mxu0 0.0
        %1408 = vmatprep.subr.mxu0 0.0
        %1409 = vmatpush1.msra.mxu0 0.0
        %1410 = vmatprep.subr.mxu0 0.0
        %1411 = vmatpush1.msra.mxu0 0.0
        %1412 = vmatprep.subr.mxu0 0.0
        %1413 = vmatpush1.msra.mxu0 0.0
        %1414 = vmatprep.subr.mxu0 0.0
        %1415 = vmatpush1.msra.mxu0 0.0
        %1416 = vmatprep.subr.mxu0 0.0
        %1417 = vmatpush1.msra.mxu0 0.0
        %1418 = vmatprep.subr.mxu0 0.0
        %1419 = vmatpush1.msra.mxu0 0.0
        %1420 = vmatprep.subr.mxu0 0.0
        %1421 = vmatpush1.msra.mxu0 %v1385
        %1422 = vmatprep.subr.mxu0 0.0
        %1423 = vmatpush2.msra.mxu0 0.0
        %1424 = vmatprep.subr.mxu0 0.0
        %1425 = vmatpush2.msra.mxu0 0.0
        %1426 = vmatprep.subr.mxu0 0.0
        %1427 = vmatpush2.msra.mxu0 0.0
        %1428 = vmatprep.subr.mxu0 0.0
        %1429 = vmatpush2.msra.mxu0 0.0
        %1430 = vmatprep.subr.mxu0 0.0
        %1431 = vmatpush2.msra.mxu0 0.0
        %1432 = vmatprep.subr.mxu0 0.0
        %1433 = vmatpush2.msra.mxu0 0.0
        %1434 = vmatprep.subr.mxu0 0.0
        %1435 = vmatpush2.msra.mxu0 0.0
        %1436 = vmatprep.subr.mxu0 0.0
        %1437 = vmatpush2.msra.mxu0 0.0
        %1438 = vmatprep.subr.mxu0 0.0
        %1439 = vmatpush2.msra.mxu0 0.0
        %1440 = vmatprep.subr.mxu0 0.0
        %1441 = vmatpush2.msra.mxu0 0.0
        %1442 = vmatprep.subr.mxu0 0.0
        %1443 = vmatpush2.msra.mxu0 0.0
        %1444 = vmatprep.subr.mxu0 0.0
        %1445 = vmatpush2.msra.mxu0 0.0
        %1446 = vmatprep.subr.mxu0 0.0
        %1447 = vmatpush2.msra.mxu0 0.0
        %1448 = vmatprep.subr.mxu0 0.0
        %1449 = vmatpush2.msra.mxu0 0.0
        %1450 = vmatprep.subr.mxu0 0.0
        %1451 = vmatpush2.msra.mxu0 0.0
        %1452 = vmatprep.subr.mxu0 0.0
        %1453 = vmatpush2.msra.mxu0 0.0
        %1454 = vmatprep.mubr.f32.mxu0 0.0
        %1455 = vmatmul.mubr.f32.gmra.mxu0 %v1388
        %v1456 = vpop.f32.mrf.mxu0
        %v1457 = vadd.f32 0.0, %v1456
        %v1458 = vpop.f32.mrf.mxu0
        %1459 = vdwg.mxu0
        %1460 = vrot.lane.b32.xlu0 %v632, 108
        %v1461 = vpop.permute.xlu0 %1460
        %1462 = vrot.lane.b32.xlu0 %v540, 108
        %v1463 = vpop.permute.xlu0 %1462
        %v1464 = vsel %vm633, %v1461, 0
        %v1466 = vsel %vm633, %v1463, 0
        %1468 = vmatprep.subr.mxu0 0.0
        %1469 = vmatpush1.xpose.msra.mxu0 0.0
        %1470 = vmatprep.subr.mxu0 0.0
        %1471 = vmatpush1.xpose.msra.mxu0 0.0
        %1472 = vmatprep.subr.mxu0 0.0
        %1473 = vmatpush1.xpose.msra.mxu0 0.0
        %1474 = vmatprep.subr.mxu0 0.0
        %1475 = vmatpush1.xpose.msra.mxu0 0.0
        %1476 = vmatprep.subr.mxu0 0.0
        %1477 = vmatpush1.xpose.msra.mxu0 0.0
        %1478 = vmatprep.subr.mxu0 0.0
        %1479 = vmatpush1.xpose.msra.mxu0 0.0
        %1480 = vmatprep.subr.mxu0 0.0
        %1481 = vmatpush1.xpose.msra.mxu0 0.0
        %1482 = vmatprep.subr.mxu0 0.0
        %1483 = vmatpush1.xpose.msra.mxu0 0.0
        %1484 = vmatprep.subr.mxu0 0.0
        %1485 = vmatpush1.xpose.msra.mxu0 0.0
        %1486 = vmatprep.subr.mxu0 0.0
        %1487 = vmatpush1.xpose.msra.mxu0 0.0
        %1488 = vmatprep.subr.mxu0 0.0
        %1489 = vmatpush1.xpose.msra.mxu0 0.0
        %1490 = vmatprep.subr.mxu0 0.0
        %1491 = vmatpush1.xpose.msra.mxu0 0.0
        %1492 = vmatprep.subr.mxu0 0.0
        %1493 = vmatpush1.xpose.msra.mxu0 0.0
        %1494 = vmatprep.subr.mxu0 0.0
        %1495 = vmatpush1.xpose.msra.mxu0 0.0
        %1496 = vmatprep.subr.mxu0 0.0
        %1497 = vmatpush1.xpose.msra.mxu0 0.0
        %1498 = vmatprep.subr.mxu0 0.0
        %1499 = vmatpush1.xpose.msra.mxu0 %v1466
        %1500 = vmatprep.subr.mxu0 0.0
        %1501 = vmatpush2.xpose.msra.mxu0 0.0
        %1502 = vmatprep.subr.mxu0 0.0
        %1503 = vmatpush2.xpose.msra.mxu0 0.0
        %1504 = vmatprep.subr.mxu0 0.0
        %1505 = vmatpush2.xpose.msra.mxu0 0.0
        %1506 = vmatprep.subr.mxu0 0.0
        %1507 = vmatpush2.xpose.msra.mxu0 0.0
        %1508 = vmatprep.subr.mxu0 0.0
        %1509 = vmatpush2.xpose.msra.mxu0 0.0
        %1510 = vmatprep.subr.mxu0 0.0
        %1511 = vmatpush2.xpose.msra.mxu0 0.0
        %1512 = vmatprep.subr.mxu0 0.0
        %1513 = vmatpush2.xpose.msra.mxu0 0.0
        %1514 = vmatprep.subr.mxu0 0.0
        %1515 = vmatpush2.xpose.msra.mxu0 0.0
        %1516 = vmatprep.subr.mxu0 0.0
        %1517 = vmatpush2.xpose.msra.mxu0 0.0
        %1518 = vmatprep.subr.mxu0 0.0
        %1519 = vmatpush2.xpose.msra.mxu0 0.0
        %1520 = vmatprep.subr.mxu0 0.0
        %1521 = vmatpush2.xpose.msra.mxu0 0.0
        %1522 = vmatprep.subr.mxu0 0.0
        %1523 = vmatpush2.xpose.msra.mxu0 0.0
        %1524 = vmatprep.subr.mxu0 0.0
        %1525 = vmatpush2.xpose.msra.mxu0 0.0
        %1526 = vmatprep.subr.mxu0 0.0
        %1527 = vmatpush2.xpose.msra.mxu0 0.0
        %1528 = vmatprep.subr.mxu0 0.0
        %1529 = vmatpush2.xpose.msra.mxu0 0.0
        %1530 = vmatprep.subr.mxu0 0.0
        %1531 = vmatpush2.xpose.msra.mxu0 0.0
        %1532 = vmatprep.mubr.f32.mxu0 0.0
        %1533 = vmatmul.mubr.f32.gmra.mxu0 %v1464
        %v1534 = vpop.f32.mrf.mxu0
        %v1535 = vadd.f32 0.0, %v1534
        %v1536 = vpop.f32.mrf.mxu0
        %1537 = vdwg.mxu0
        %v1538 = vsel %vm710, %v1535, -inf
        %1539 = vmax.xlane.f32.xlu0 %v1538
        %v1540 = vpop.xlane.xlu0 %1539
        %v1541 = vsub.f32 %v1535, %v1540
        %v1542 = vmul.f32 %v1541, 1.442695
        %v1543 = vpow.pop %v1542
        %v1544 = vsel %vm710, %v1543, 0.0
        %1545 = vadd.xlane.f32.xlu0 %v1544
        %v1546 = vpop.xlane.xlu0 %1545
        %v1547 = vrcp.pop %v1546
        %v1548 = vmul.f32 %v1543, %v1547
        %v1549 = vadd.f32 %v1383, %v1548
        %1550 = vrot.lane.b32.xlu0 %v629, 108
        %v1551 = vpop.permute.xlu0 %1550
        %v1554 = vsel %vm710, %v1548, 0
        %1556 = vmatprep.subr.mxu0 0.0
        %1557 = vmatpush1.msra.mxu0 0.0
        %1558 = vmatprep.subr.mxu0 0.0
        %1559 = vmatpush1.msra.mxu0 0.0
        %1560 = vmatprep.subr.mxu0 0.0
        %1561 = vmatpush1.msra.mxu0 0.0
        %1562 = vmatprep.subr.mxu0 0.0
        %1563 = vmatpush1.msra.mxu0 0.0
        %1564 = vmatprep.subr.mxu0 0.0
        %1565 = vmatpush1.msra.mxu0 0.0
        %1566 = vmatprep.subr.mxu0 0.0
        %1567 = vmatpush1.msra.mxu0 0.0
        %1568 = vmatprep.subr.mxu0 0.0
        %1569 = vmatpush1.msra.mxu0 0.0
        %1570 = vmatprep.subr.mxu0 0.0
        %1571 = vmatpush1.msra.mxu0 0.0
        %1572 = vmatprep.subr.mxu0 0.0
        %1573 = vmatpush1.msra.mxu0 0.0
        %1574 = vmatprep.subr.mxu0 0.0
        %1575 = vmatpush1.msra.mxu0 0.0
        %1576 = vmatprep.subr.mxu0 0.0
        %1577 = vmatpush1.msra.mxu0 0.0
        %1578 = vmatprep.subr.mxu0 0.0
        %1579 = vmatpush1.msra.mxu0 0.0
        %1580 = vmatprep.subr.mxu0 0.0
        %1581 = vmatpush1.msra.mxu0 0.0
        %1582 = vmatprep.subr.mxu0 0.0
        %1583 = vmatpush1.msra.mxu0 0.0
        %1584 = vmatprep.subr.mxu0 0.0
        %1585 = vmatpush1.msra.mxu0 0.0
        %1586 = vmatprep.subr.mxu0 0.0
        %1587 = vmatpush1.msra.mxu0 %v1551
        %1588 = vmatprep.subr.mxu0 0.0
        %1589 = vmatpush2.msra.mxu0 0.0
        %1590 = vmatprep.subr.mxu0 0.0
        %1591 = vmatpush2.msra.mxu0 0.0
        %1592 = vmatprep.subr.mxu0 0.0
        %1593 = vmatpush2.msra.mxu0 0.0
        %1594 = vmatprep.subr.mxu0 0.0
        %1595 = vmatpush2.msra.mxu0 0.0
        %1596 = vmatprep.subr.mxu0 0.0
        %1597 = vmatpush2.msra.mxu0 0.0
        %1598 = vmatprep.subr.mxu0 0.0
        %1599 = vmatpush2.msra.mxu0 0.0
        %1600 = vmatprep.subr.mxu0 0.0
        %1601 = vmatpush2.msra.mxu0 0.0
        %1602 = vmatprep.subr.mxu0 0.0
        %1603 = vmatpush2.msra.mxu0 0.0
        %1604 = vmatprep.subr.mxu0 0.0
        %1605 = vmatpush2.msra.mxu0 0.0
        %1606 = vmatprep.subr.mxu0 0.0
        %1607 = vmatpush2.msra.mxu0 0.0
        %1608 = vmatprep.subr.mxu0 0.0
        %1609 = vmatpush2.msra.mxu0 0.0
        %1610 = vmatprep.subr.mxu0 0.0
        %1611 = vmatpush2.msra.mxu0 0.0
        %1612 = vmatprep.subr.mxu0 0.0
        %1613 = vmatpush2.msra.mxu0 0.0
        %1614 = vmatprep.subr.mxu0 0.0
        %1615 = vmatpush2.msra.mxu0 0.0
        %1616 = vmatprep.subr.mxu0 0.0
        %1617 = vmatpush2.msra.mxu0 0.0
        %1618 = vmatprep.subr.mxu0 0.0
        %1619 = vmatpush2.msra.mxu0 0.0
        %1620 = vmatprep.mubr.f32.mxu0 0.0
        %1621 = vmatmul.mubr.f32.gmra.mxu0 %v1554
        %v1622 = vpop.f32.mrf.mxu0
        %v1623 = vadd.f32 0.0, %v1622
        %v1624 = vpop.f32.mrf.mxu0
        %1625 = vdwg.mxu0
        %1626 = vrot.lane.b32.xlu0 %v632, 104
        %v1627 = vpop.permute.xlu0 %1626
        %1628 = vrot.lane.b32.xlu0 %v540, 104
        %v1629 = vpop.permute.xlu0 %1628
        %v1630 = vsel %vm633, %v1627, 0
        %v1632 = vsel %vm633, %v1629, 0
        %1634 = vmatprep.subr.mxu0 0.0
        %1635 = vmatpush1.xpose.msra.mxu0 0.0
        %1636 = vmatprep.subr.mxu0 0.0
        %1637 = vmatpush1.xpose.msra.mxu0 0.0
        %1638 = vmatprep.subr.mxu0 0.0
        %1639 = vmatpush1.xpose.msra.mxu0 0.0
        %1640 = vmatprep.subr.mxu0 0.0
        %1641 = vmatpush1.xpose.msra.mxu0 0.0
        %1642 = vmatprep.subr.mxu0 0.0
        %1643 = vmatpush1.xpose.msra.mxu0 0.0
        %1644 = vmatprep.subr.mxu0 0.0
        %1645 = vmatpush1.xpose.msra.mxu0 0.0
        %1646 = vmatprep.subr.mxu0 0.0
        %1647 = vmatpush1.xpose.msra.mxu0 0.0
        %1648 = vmatprep.subr.mxu0 0.0
        %1649 = vmatpush1.xpose.msra.mxu0 0.0
        %1650 = vmatprep.subr.mxu0 0.0
        %1651 = vmatpush1.xpose.msra.mxu0 0.0
        %1652 = vmatprep.subr.mxu0 0.0
        %1653 = vmatpush1.xpose.msra.mxu0 0.0
        %1654 = vmatprep.subr.mxu0 0.0
        %1655 = vmatpush1.xpose.msra.mxu0 0.0
        %1656 = vmatprep.subr.mxu0 0.0
        %1657 = vmatpush1.xpose.msra.mxu0 0.0
        %1658 = vmatprep.subr.mxu0 0.0
        %1659 = vmatpush1.xpose.msra.mxu0 0.0
        %1660 = vmatprep.subr.mxu0 0.0
        %1661 = vmatpush1.xpose.msra.mxu0 0.0
        %1662 = vmatprep.subr.mxu0 0.0
        %1663 = vmatpush1.xpose.msra.mxu0 0.0
        %1664 = vmatprep.subr.mxu0 0.0
        %1665 = vmatpush1.xpose.msra.mxu0 %v1632
        %1666 = vmatprep.subr.mxu0 0.0
        %1667 = vmatpush2.xpose.msra.mxu0 0.0
        %1668 = vmatprep.subr.mxu0 0.0
        %1669 = vmatpush2.xpose.msra.mxu0 0.0
        %1670 = vmatprep.subr.mxu0 0.0
        %1671 = vmatpush2.xpose.msra.mxu0 0.0
        %1672 = vmatprep.subr.mxu0 0.0
        %1673 = vmatpush2.xpose.msra.mxu0 0.0
        %1674 = vmatprep.subr.mxu0 0.0
        %1675 = vmatpush2.xpose.msra.mxu0 0.0
        %1676 = vmatprep.subr.mxu0 0.0
        %1677 = vmatpush2.xpose.msra.mxu0 0.0
        %1678 = vmatprep.subr.mxu0 0.0
        %1679 = vmatpush2.xpose.msra.mxu0 0.0
        %1680 = vmatprep.subr.mxu0 0.0
        %1681 = vmatpush2.xpose.msra.mxu0 0.0
        %1682 = vmatprep.subr.mxu0 0.0
        %1683 = vmatpush2.xpose.msra.mxu0 0.0
        %1684 = vmatprep.subr.mxu0 0.0
        %1685 = vmatpush2.xpose.msra.mxu0 0.0
        %1686 = vmatprep.subr.mxu0 0.0
        %1687 = vmatpush2.xpose.msra.mxu0 0.0
        %1688 = vmatprep.subr.mxu0 0.0
        %1689 = vmatpush2.xpose.msra.mxu0 0.0
        %1690 = vmatprep.subr.mxu0 0.0
        %1691 = vmatpush2.xpose.msra.mxu0 0.0
        %1692 = vmatprep.subr.mxu0 0.0
        %1693 = vmatpush2.xpose.msra.mxu0 0.0
        %1694 = vmatprep.subr.mxu0 0.0
        %1695 = vmatpush2.xpose.msra.mxu0 0.0
        %1696 = vmatprep.subr.mxu0 0.0
        %1697 = vmatpush2.xpose.msra.mxu0 0.0
        %1698 = vmatprep.mubr.f32.mxu0 0.0
        %1699 = vmatmul.mubr.f32.gmra.mxu0 %v1630
        %v1700 = vpop.f32.mrf.mxu0
        %v1701 = vadd.f32 0.0, %v1700
        %v1702 = vpop.f32.mrf.mxu0
        %1703 = vdwg.mxu0
        %v1704 = vsel %vm710, %v1701, -inf
        %1705 = vmax.xlane.f32.xlu0 %v1704
        %v1706 = vpop.xlane.xlu0 %1705
        %v1707 = vsub.f32 %v1701, %v1706
        %v1708 = vmul.f32 %v1707, 1.442695
        %v1709 = vpow.pop %v1708
        %v1710 = vsel %vm710, %v1709, 0.0
        %1711 = vadd.xlane.f32.xlu0 %v1710
        %v1712 = vpop.xlane.xlu0 %1711
        %v1713 = vrcp.pop %v1712
        %v1714 = vmul.f32 %v1709, %v1713
        %v1715 = vadd.f32 %v1549, %v1714
        %1716 = vrot.lane.b32.xlu0 %v629, 104
        %v1717 = vpop.permute.xlu0 %1716
        %v1720 = vsel %vm710, %v1714, 0
        %1722 = vmatprep.subr.mxu0 0.0
        %1723 = vmatpush1.msra.mxu0 0.0
        %1724 = vmatprep.subr.mxu0 0.0
        %1725 = vmatpush1.msra.mxu0 0.0
        %1726 = vmatprep.subr.mxu0 0.0
        %1727 = vmatpush1.msra.mxu0 0.0
        %1728 = vmatprep.subr.mxu0 0.0
        %1729 = vmatpush1.msra.mxu0 0.0
        %1730 = vmatprep.subr.mxu0 0.0
        %1731 = vmatpush1.msra.mxu0 0.0
        %1732 = vmatprep.subr.mxu0 0.0
        %1733 = vmatpush1.msra.mxu0 0.0
        %1734 = vmatprep.subr.mxu0 0.0
        %1735 = vmatpush1.msra.mxu0 0.0
        %1736 = vmatprep.subr.mxu0 0.0
        %1737 = vmatpush1.msra.mxu0 0.0
        %1738 = vmatprep.subr.mxu0 0.0
        %1739 = vmatpush1.msra.mxu0 0.0
        %1740 = vmatprep.subr.mxu0 0.0
        %1741 = vmatpush1.msra.mxu0 0.0
        %1742 = vmatprep.subr.mxu0 0.0
        %1743 = vmatpush1.msra.mxu0 0.0
        %1744 = vmatprep.subr.mxu0 0.0
        %1745 = vmatpush1.msra.mxu0 0.0
        %1746 = vmatprep.subr.mxu0 0.0
        %1747 = vmatpush1.msra.mxu0 0.0
        %1748 = vmatprep.subr.mxu0 0.0
        %1749 = vmatpush1.msra.mxu0 0.0
        %1750 = vmatprep.subr.mxu0 0.0
        %1751 = vmatpush1.msra.mxu0 0.0
        %1752 = vmatprep.subr.mxu0 0.0
        %1753 = vmatpush1.msra.mxu0 %v1717
        %1754 = vmatprep.subr.mxu0 0.0
        %1755 = vmatpush2.msra.mxu0 0.0
        %1756 = vmatprep.subr.mxu0 0.0
        %1757 = vmatpush2.msra.mxu0 0.0
        %1758 = vmatprep.subr.mxu0 0.0
        %1759 = vmatpush2.msra.mxu0 0.0
        %1760 = vmatprep.subr.mxu0 0.0
        %1761 = vmatpush2.msra.mxu0 0.0
        %1762 = vmatprep.subr.mxu0 0.0
        %1763 = vmatpush2.msra.mxu0 0.0
        %1764 = vmatprep.subr.mxu0 0.0
        %1765 = vmatpush2.msra.mxu0 0.0
        %1766 = vmatprep.subr.mxu0 0.0
        %1767 = vmatpush2.msra.mxu0 0.0
        %1768 = vmatprep.subr.mxu0 0.0
        %1769 = vmatpush2.msra.mxu0 0.0
        %1770 = vmatprep.subr.mxu0 0.0
        %1771 = vmatpush2.msra.mxu0 0.0
        %1772 = vmatprep.subr.mxu0 0.0
        %1773 = vmatpush2.msra.mxu0 0.0
        %1774 = vmatprep.subr.mxu0 0.0
        %1775 = vmatpush2.msra.mxu0 0.0
        %1776 = vmatprep.subr.mxu0 0.0
        %1777 = vmatpush2.msra.mxu0 0.0
        %1778 = vmatprep.subr.mxu0 0.0
        %1779 = vmatpush2.msra.mxu0 0.0
        %1780 = vmatprep.subr.mxu0 0.0
        %1781 = vmatpush2.msra.mxu0 0.0
        %1782 = vmatprep.subr.mxu0 0.0
        %1783 = vmatpush2.msra.mxu0 0.0
        %1784 = vmatprep.subr.mxu0 0.0
        %1785 = vmatpush2.msra.mxu0 0.0
        %1786 = vmatprep.mubr.f32.mxu0 0.0
        %1787 = vmatmul.mubr.f32.gmra.mxu0 %v1720
        %v1788 = vpop.f32.mrf.mxu0
        %v1789 = vadd.f32 0.0, %v1788
        %v1790 = vpop.f32.mrf.mxu0
        %1791 = vdwg.mxu0
        %1792 = vrot.lane.b32.xlu0 %v632, 100
        %v1793 = vpop.permute.xlu0 %1792
        %1794 = vrot.lane.b32.xlu0 %v540, 100
        %v1795 = vpop.permute.xlu0 %1794
        %v1796 = vsel %vm633, %v1793, 0
        %v1798 = vsel %vm633, %v1795, 0
        %1800 = vmatprep.subr.mxu0 0.0
        %1801 = vmatpush1.xpose.msra.mxu0 0.0
        %1802 = vmatprep.subr.mxu0 0.0
        %1803 = vmatpush1.xpose.msra.mxu0 0.0
        %1804 = vmatprep.subr.mxu0 0.0
        %1805 = vmatpush1.xpose.msra.mxu0 0.0
        %1806 = vmatprep.subr.mxu0 0.0
        %1807 = vmatpush1.xpose.msra.mxu0 0.0
        %1808 = vmatprep.subr.mxu0 0.0
        %1809 = vmatpush1.xpose.msra.mxu0 0.0
        %1810 = vmatprep.subr.mxu0 0.0
        %1811 = vmatpush1.xpose.msra.mxu0 0.0
        %1812 = vmatprep.subr.mxu0 0.0
        %1813 = vmatpush1.xpose.msra.mxu0 0.0
        %1814 = vmatprep.subr.mxu0 0.0
        %1815 = vmatpush1.xpose.msra.mxu0 0.0
        %1816 = vmatprep.subr.mxu0 0.0
        %1817 = vmatpush1.xpose.msra.mxu0 0.0
        %1818 = vmatprep.subr.mxu0 0.0
        %1819 = vmatpush1.xpose.msra.mxu0 0.0
        %1820 = vmatprep.subr.mxu0 0.0
        %1821 = vmatpush1.xpose.msra.mxu0 0.0
        %1822 = vmatprep.subr.mxu0 0.0
        %1823 = vmatpush1.xpose.msra.mxu0 0.0
        %1824 = vmatprep.subr.mxu0 0.0
        %1825 = vmatpush1.xpose.msra.mxu0 0.0
        %1826 = vmatprep.subr.mxu0 0.0
        %1827 = vmatpush1.xpose.msra.mxu0 0.0
        %1828 = vmatprep.subr.mxu0 0.0
        %1829 = vmatpush1.xpose.msra.mxu0 0.0
        %1830 = vmatprep.subr.mxu0 0.0
        %1831 = vmatpush1.xpose.msra.mxu0 %v1798
        %1832 = vmatprep.subr.mxu0 0.0
        %1833 = vmatpush2.xpose.msra.mxu0 0.0
        %1834 = vmatprep.subr.mxu0 0.0
        %1835 = vmatpush2.xpose.msra.mxu0 0.0
        %1836 = vmatprep.subr.mxu0 0.0
        %1837 = vmatpush2.xpose.msra.mxu0 0.0
        %1838 = vmatprep.subr.mxu0 0.0
        %1839 = vmatpush2.xpose.msra.mxu0 0.0
        %1840 = vmatprep.subr.mxu0 0.0
        %1841 = vmatpush2.xpose.msra.mxu0 0.0
        %1842 = vmatprep.subr.mxu0 0.0
        %1843 = vmatpush2.xpose.msra.mxu0 0.0
        %1844 = vmatprep.subr.mxu0 0.0
        %1845 = vmatpush2.xpose.msra.mxu0 0.0
        %1846 = vmatprep.subr.mxu0 0.0
        %1847 = vmatpush2.xpose.msra.mxu0 0.0
        %1848 = vmatprep.subr.mxu0 0.0
        %1849 = vmatpush2.xpose.msra.mxu0 0.0
        %1850 = vmatprep.subr.mxu0 0.0
        %1851 = vmatpush2.xpose.msra.mxu0 0.0
        %1852 = vmatprep.subr.mxu0 0.0
        %1853 = vmatpush2.xpose.msra.mxu0 0.0
        %1854 = vmatprep.subr.mxu0 0.0
        %1855 = vmatpush2.xpose.msra.mxu0 0.0
        %1856 = vmatprep.subr.mxu0 0.0
        %1857 = vmatpush2.xpose.msra.mxu0 0.0
        %1858 = vmatprep.subr.mxu0 0.0
        %1859 = vmatpush2.xpose.msra.mxu0 0.0
        %1860 = vmatprep.subr.mxu0 0.0
        %1861 = vmatpush2.xpose.msra.mxu0 0.0
        %1862 = vmatprep.subr.mxu0 0.0
        %1863 = vmatpush2.xpose.msra.mxu0 0.0
        %1864 = vmatprep.mubr.f32.mxu0 0.0
        %1865 = vmatmul.mubr.f32.gmra.mxu0 %v1796
        %v1866 = vpop.f32.mrf.mxu0
        %v1867 = vadd.f32 0.0, %v1866
        %v1868 = vpop.f32.mrf.mxu0
        %1869 = vdwg.mxu0
        %v1870 = vsel %vm710, %v1867, -inf
        %1871 = vmax.xlane.f32.xlu0 %v1870
        %v1872 = vpop.xlane.xlu0 %1871
        %v1873 = vsub.f32 %v1867, %v1872
        %v1874 = vmul.f32 %v1873, 1.442695
        %v1875 = vpow.pop %v1874
        %v1876 = vsel %vm710, %v1875, 0.0
        %1877 = vadd.xlane.f32.xlu0 %v1876
        %v1878 = vpop.xlane.xlu0 %1877
        %v1879 = vrcp.pop %v1878
        %v1880 = vmul.f32 %v1875, %v1879
        %v1881 = vadd.f32 %v1715, %v1880
        %1882 = vrot.lane.b32.xlu0 %v629, 100
        %v1883 = vpop.permute.xlu0 %1882
        %v1886 = vsel %vm710, %v1880, 0
        %1888 = vmatprep.subr.mxu0 0.0
        %1889 = vmatpush1.msra.mxu0 0.0
        %1890 = vmatprep.subr.mxu0 0.0
        %1891 = vmatpush1.msra.mxu0 0.0
        %1892 = vmatprep.subr.mxu0 0.0
        %1893 = vmatpush1.msra.mxu0 0.0
        %1894 = vmatprep.subr.mxu0 0.0
        %1895 = vmatpush1.msra.mxu0 0.0
        %1896 = vmatprep.subr.mxu0 0.0
        %1897 = vmatpush1.msra.mxu0 0.0
        %1898 = vmatprep.subr.mxu0 0.0
        %1899 = vmatpush1.msra.mxu0 0.0
        %1900 = vmatprep.subr.mxu0 0.0
        %1901 = vmatpush1.msra.mxu0 0.0
        %1902 = vmatprep.subr.mxu0 0.0
        %1903 = vmatpush1.msra.mxu0 0.0
        %1904 = vmatprep.subr.mxu0 0.0
        %1905 = vmatpush1.msra.mxu0 0.0
        %1906 = vmatprep.subr.mxu0 0.0
        %1907 = vmatpush1.msra.mxu0 0.0
        %1908 = vmatprep.subr.mxu0 0.0
        %1909 = vmatpush1.msra.mxu0 0.0
        %1910 = vmatprep.subr.mxu0 0.0
        %1911 = vmatpush1.msra.mxu0 0.0
        %1912 = vmatprep.subr.mxu0 0.0
        %1913 = vmatpush1.msra.mxu0 0.0
        %1914 = vmatprep.subr.mxu0 0.0
        %1915 = vmatpush1.msra.mxu0 0.0
        %1916 = vmatprep.subr.mxu0 0.0
        %1917 = vmatpush1.msra.mxu0 0.0
        %1918 = vmatprep.subr.mxu0 0.0
        %1919 = vmatpush1.msra.mxu0 %v1883
        %1920 = vmatprep.subr.mxu0 0.0
        %1921 = vmatpush2.msra.mxu0 0.0
        %1922 = vmatprep.subr.mxu0 0.0
        %1923 = vmatpush2.msra.mxu0 0.0
        %1924 = vmatprep.subr.mxu0 0.0
        %1925 = vmatpush2.msra.mxu0 0.0
        %1926 = vmatprep.subr.mxu0 0.0
        %1927 = vmatpush2.msra.mxu0 0.0
        %1928 = vmatprep.subr.mxu0 0.0
        %1929 = vmatpush2.msra.mxu0 0.0
        %1930 = vmatprep.subr.mxu0 0.0
        %1931 = vmatpush2.msra.mxu0 0.0
        %1932 = vmatprep.subr.mxu0 0.0
        %1933 = vmatpush2.msra.mxu0 0.0
        %1934 = vmatprep.subr.mxu0 0.0
        %1935 = vmatpush2.msra.mxu0 0.0
        %1936 = vmatprep.subr.mxu0 0.0
        %1937 = vmatpush2.msra.mxu0 0.0
        %1938 = vmatprep.subr.mxu0 0.0
        %1939 = vmatpush2.msra.mxu0 0.0
        %1940 = vmatprep.subr.mxu0 0.0
        %1941 = vmatpush2.msra.mxu0 0.0
        %1942 = vmatprep.subr.mxu0 0.0
        %1943 = vmatpush2.msra.mxu0 0.0
        %1944 = vmatprep.subr.mxu0 0.0
        %1945 = vmatpush2.msra.mxu0 0.0
        %1946 = vmatprep.subr.mxu0 0.0
        %1947 = vmatpush2.msra.mxu0 0.0
        %1948 = vmatprep.subr.mxu0 0.0
        %1949 = vmatpush2.msra.mxu0 0.0
        %1950 = vmatprep.subr.mxu0 0.0
        %1951 = vmatpush2.msra.mxu0 0.0
        %1952 = vmatprep.mubr.f32.mxu0 0.0
        %1953 = vmatmul.mubr.f32.gmra.mxu0 %v1886
        %v1954 = vpop.f32.mrf.mxu0
        %v1955 = vadd.f32 0.0, %v1954
        %v1956 = vpop.f32.mrf.mxu0
        %1957 = vdwg.mxu0
        %1959 = vrot.lane.b32.xlu0 %v959, 4
        %v1960 = vpop.permute.xlu0 %1959
        %1963 = vrot.lane.b32.xlu0 %v1125, 8
        %v1964 = vpop.permute.xlu0 %1963
        %1967 = vrot.lane.b32.xlu0 %v1291, 12
        %v1968 = vpop.permute.xlu0 %1967
        %1971 = vrot.lane.b32.xlu0 %v1457, 16
        %v1972 = vpop.permute.xlu0 %1971
        %1975 = vrot.lane.b32.xlu0 %v1623, 20
        %v1976 = vpop.permute.xlu0 %1975
        %1979 = vrot.lane.b32.xlu0 %v1789, 24
        %v1980 = vpop.permute.xlu0 %1979
        %1983 = vrot.lane.b32.xlu0 %v1955, 28
        %v1984 = vpop.permute.xlu0 %1983
        %v1986 = vsel %vm633, %v792, %v1960
        %v1987 = vsel %vm710, %v1986, %v1964
        %vm1988 = vcmask 97280
        %v1989 = vsel %vm1988, %v1987, %v1968
        %vm1990 = vcmask 130048
        %v1991 = vsel %vm1990, %v1989, %v1972
        %vm1992 = vcmask 162816
        %v1993 = vsel %vm1992, %v1991, %v1976
        %vm1994 = vcmask 195584
        %v1995 = vsel %vm1994, %v1993, %v1980
        %vm1996 = vcmask 228352
        %v1997 = vsel %vm1996, %v1995, %v1984
        %v1998 = vld [vmem:[%s5] sm:$0xff]
        %v1999 = vld [vmem:[%s5 + $0x8] sm:$0xff]
        %v2000 = vld [vmem:[%s5 + $0x10] sm:$0xff]
        %v2001 = vld [vmem:[%s5 + $0x18] sm:$0xff]
        %v2002 = vld [vmem:[%s6] sm:$0x1]
        %v2004 = vlaneseq
        %v2005 = vshrl.u32 %v2004, 7
        %v2006 = vsub.s32 0, %v2005
        %v2007 = vrot.slane %v2002, %v2006
        %v2010 = vsel %vm368, %v1997, 0
        %v2013 = vsel %vm368, %v1998, 0
        %v2016 = vsel %vm368, %v1999, 0
        %v2019 = vsel %vm368, %v2000, 0
        %v2022 = vsel %vm368, %v2001, 0
        %2024 = vmatprep.subr.mxu0 0.0
        %2025 = vmatpush1.xpose.msra.mxu0 0.0
        %2026 = vmatprep.subr.mxu0 0.0
        %2027 = vmatpush1.xpose.msra.mxu0 0.0
        %2028 = vmatprep.subr.mxu0 0.0
        %2029 = vmatpush1.xpose.msra.mxu0 0.0
        %2030 = vmatprep.subr.mxu0 0.0
        %2031 = vmatpush1.xpose.msra.mxu0 0.0
        %2032 = vmatprep.subr.mxu0 0.0
        %2033 = vmatpush1.xpose.msra.mxu0 0.0
        %2034 = vmatprep.subr.mxu0 0.0
        %2035 = vmatpush1.xpose.msra.mxu0 0.0
        %2036 = vmatprep.subr.mxu0 0.0
        %2037 = vmatpush1.xpose.msra.mxu0 0.0
        %2038 = vmatprep.subr.mxu0 0.0
        %2039 = vmatpush1.xpose.msra.mxu0 0.0
        %2040 = vmatprep.subr.mxu0 0.0
        %2041 = vmatpush1.xpose.msra.mxu0 0.0
        %2042 = vmatprep.subr.mxu0 0.0
        %2043 = vmatpush1.xpose.msra.mxu0 0.0
        %2044 = vmatprep.subr.mxu0 0.0
        %2045 = vmatpush1.xpose.msra.mxu0 0.0
        %2046 = vmatprep.subr.mxu0 0.0
        %2047 = vmatpush1.xpose.msra.mxu0 0.0
        %2048 = vmatprep.subr.mxu0 0.0
        %2049 = vmatpush1.xpose.msra.mxu0 %v2022
        %2050 = vmatprep.subr.mxu0 0.0
        %2051 = vmatpush1.xpose.msra.mxu0 %v2019
        %2052 = vmatprep.subr.mxu0 0.0
        %2053 = vmatpush1.xpose.msra.mxu0 %v2016
        %2054 = vmatprep.subr.mxu0 0.0
        %2055 = vmatpush1.xpose.msra.mxu0 %v2013
        %2056 = vmatprep.subr.mxu0 0.0
        %2057 = vmatpush2.xpose.msra.mxu0 0.0
        %2058 = vmatprep.subr.mxu0 0.0
        %2059 = vmatpush2.xpose.msra.mxu0 0.0
        %2060 = vmatprep.subr.mxu0 0.0
        %2061 = vmatpush2.xpose.msra.mxu0 0.0
        %2062 = vmatprep.subr.mxu0 0.0
        %2063 = vmatpush2.xpose.msra.mxu0 0.0
        %2064 = vmatprep.subr.mxu0 0.0
        %2065 = vmatpush2.xpose.msra.mxu0 0.0
        %2066 = vmatprep.subr.mxu0 0.0
        %2067 = vmatpush2.xpose.msra.mxu0 0.0
        %2068 = vmatprep.subr.mxu0 0.0
        %2069 = vmatpush2.xpose.msra.mxu0 0.0
        %2070 = vmatprep.subr.mxu0 0.0
        %2071 = vmatpush2.xpose.msra.mxu0 0.0
        %2072 = vmatprep.subr.mxu0 0.0
        %2073 = vmatpush2.xpose.msra.mxu0 0.0
        %2074 = vmatprep.subr.mxu0 0.0
        %2075 = vmatpush2.xpose.msra.mxu0 0.0
        %2076 = vmatprep.subr.mxu0 0.0
        %2077 = vmatpush2.xpose.msra.mxu0 0.0
        %2078 = vmatprep.subr.mxu0 0.0
        %2079 = vmatpush2.xpose.msra.mxu0 0.0
        %2080 = vmatprep.subr.mxu0 0.0
        %2081 = vmatpush2.xpose.msra.mxu0 0.0
        %2082 = vmatprep.subr.mxu0 0.0
        %2083 = vmatpush2.xpose.msra.mxu0 0.0
        %2084 = vmatprep.subr.mxu0 0.0
        %2085 = vmatpush2.xpose.msra.mxu0 0.0
        %2086 = vmatprep.subr.mxu0 0.0
        %2087 = vmatpush2.xpose.msra.mxu0 0.0
        %2088 = vmatprep.mubr.f32.mxu0 0.0
        %2089 = vmatmul.mubr.f32.gmra.mxu0 %v2010
        %v2090 = vpop.f32.mrf.mxu0
        %v2091 = vadd.f32 %v2007, %v2090
        %v2092 = vpop.f32.mrf.mxu0
        %2093 = vdwg.mxu0
        %2094 = vst.msk [vmem:[%s345] sm:$0xff] %vm368, %v2091
        %v2095 = vmul.f32 %v1881, 0.125
        %2096 = vst.msk [vmem:[%s329] sm:$0xff] %vm710, %v2095
        %p2097 = scmp.lt.s32.totalorder %s23, 1
        %s2098 = scalar_select %p2097, %s23, 1
        %s2099 = smul.addr %s2098, 8
        %s2100 = scalar_lea.vmem %s7, %s2099
        %s2101 = sand.u32 %s219, 1
        %s2102 = scalar_lea.sflag [#allocation3], %s2101
        %s2103 = sand.u32 %s219, 1
        %s2104 = smul.addr %s2103, 8
        %s2105 = scalar_lea.vmem [#allocation2], %s2104
        // Predicated region
        $region49: #{mha_forward.1} parent=47 // pred_check
          %p2106 = pneg %p203
        $region50: #{mha_forward.1} parent=47 // pred_check_branch
          %2108 = sbr.rel (%p2106) target = $region52
        $region51: #{mha_forward.1} parent=47 // pred_region
          _
        $region52: #{mha_forward.1} parent=47 // pred_fallthru
          _
        // Predicated region
        $region53: #{mha_forward.1} parent=47 // pred_check
          %p2109 = pneg %p229
        $region54: #{mha_forward.1} parent=47 // pred_check_branch
          %2111 = sbr.rel (%p2109) target = $region56
        $region55: #{mha_forward.1} parent=47 // pred_region
          %s2113 = ssub.s32 128, 128
          %2114 = vsyncadd %s2102, %s2113
          %s2115 = smul.addr %s23, 128
          %s2116 = scalar_lea.hbm %s8, %s2115
          %s2118 = sshll.u32 %s2105, 4
          %s2119 = int_to_ptr.vmem [resolvable:$true] %s2118
          %2121 = dma.vmem_to_hbm [thread:$0]  %s2119, 128, %s2116, %s2102
        $region56: #{mha_forward.1} parent=47 // pred_fallthru
          _
      $region48: #{mha_forward.1} parent=5 // pred_fallthru
        _
      %p2122 = scmp.le.s32.totalorder 2, %s18
      // Predicated region
      $region57: #{mha_forward.1} parent=5 // pred_check
        %p2123 = pneg %p2122
      $region58: #{mha_forward.1} parent=5 // pred_check_branch
        %2125 = sbr.rel (%p2123) target = $region60
      $region59: #{mha_forward.1} parent=5 // pred_region
        %s2126 = ssub.s32 %s18, 2
        // Predicated region
        $region61: #{mha_forward.1} parent=59 // pred_check
          %p2127 = pneg %p209
        $region62: #{mha_forward.1} parent=59 // pred_check_branch
          %2129 = sbr.rel (%p2127) target = $region64
        $region63: #{mha_forward.1} parent=59 // pred_region
          %p2130 = scmp.lt.s32.totalorder %s24, 1
          %s2131 = scalar_select %p2130, %s24, 1
          %s2132 = smul.addr %s2131, 8
          %s2133 = scalar_lea.vmem %s7, %s2132
        $region64: #{mha_forward.1} parent=59 // pred_fallthru
          _
        // Predicated region
        $region65: #{mha_forward.1} parent=59 // pred_check
          %p2134 = pneg %p235
        $region66: #{mha_forward.1} parent=59 // pred_check_branch
          %2136 = sbr.rel (%p2134) target = $region68
        $region67: #{mha_forward.1} parent=59 // pred_region
          %s2137 = sand.u32 %s220, 1
          %s2138 = scalar_lea.sflag [#allocation3], %s2137
          %s2139 = sand.u32 %s220, 1
          %s2140 = smul.addr %s2139, 8
          %s2141 = scalar_lea.vmem [#allocation2], %s2140
          %2142 = dma.done %s2138, 128
        $region68: #{mha_forward.1} parent=59 // pred_fallthru
          _
      $region60: #{mha_forward.1} parent=5 // pred_fallthru
        _
    $region6: #{mha_forward.1} parent=1 // loop_footer
      %s22 = sadd.s32 1, %s18
    $region7: #{mha_forward.1} parent=1 // loop_footer_branch
      %17 = sbr.rel target = $region3
    $region8: #{mha_forward.1} parent=1 // loop_exit
      _
    %2143 = vsyncpa [#allocation3], 1
    %s2144 = scalar_lea.sflag [#allocation3], 1
    %2145 = vsyncpa %s2144, 1

</llo_original>
